<compile_context>
chip_gen: v5e
topology: v5e:2x2
jax: 0.10.0
libtpu: 0.0.40
codegen_flags: <defaults>
</compile_context>

<pallas_src>
import functools
import numpy as np
import jax
import jax.numpy as jnp
from jax import lax
from jax.experimental import pallas as pl
from jax.experimental.pallas import tpu as pltpu

LANE = 128
SUBLANE = 8


# ------------------------------ fused kernel ---------------------------------
def fused_model_kernel(x_ref, wconv_ref, bconv_ref, wih_ref, whh_ref, blstm_ref,
                       whead_ref, bhead_ref, out_ref):
    """Single-launch fused forward pass (all operands resident in VMEM).

    x_ref    : (T*Bp, (H+2)*(W+2)*C)   zero-padded frames, one/row, time-major
    wconv_ref: ((H+2)*(W+2)*C, H*W*F)  Toeplitz-expanded conv weight
    bconv_ref: (1, H*W*F)
    wih_ref  : (H*W*F, 4*HP)           gate-band padded (HP = 128)
    whh_ref  : (HP, 4*HP)              gate-band padded, pad rows zero
    blstm_ref: (1, 4*HP)               pad lanes zero
    whead_ref: (HP, NCP)               pad rows/cols zero
    bhead_ref: (1, NCP)                -1e30 in padded class lanes
    out_ref  : (Bp, NCP)               softmax probabilities (pad lanes = 0)
    """
    Bp = out_ref.shape[0]
    TB = x_ref.shape[0]
    T = TB // Bp
    HP = whh_ref.shape[0]                 # padded hidden width (128)

    # --- TimeDistributed Conv2D(3x3, SAME) + ReLU: one lane-dense MXU matmul
    #     over all T*Bp frames at once.
    feat = jnp.dot(x_ref[...], wconv_ref[...], preferred_element_type=jnp.float32)
    feat = jnp.maximum(feat + bconv_ref[...], 0.0)                  # (T*Bp, D)

    # --- LSTM input projection for all timesteps, bias folded in once
    #     (hoisted out of the recurrence).
    xproj = jnp.dot(feat, wih_ref[...], preferred_element_type=jnp.float32)
    xproj = xproj + blstm_ref[...]                                  # (T*Bp, 4*HP)

    # --- Recurrence, fully unrolled (T small & static); h/c stay in vregs.
    whh = whh_ref[...]                                              # loop-invariant
    h = jnp.zeros((Bp, HP), jnp.float32)
    c = jnp.zeros((Bp, HP), jnp.float32)
    for t in range(T):
        gates = xproj[t * Bp:(t + 1) * Bp, :] + jnp.dot(
            h, whh, preferred_element_type=jnp.float32)             # (Bp, 4*HP)
        sg = jax.nn.sigmoid(gates)          # full-vreg EUP op
        th = jnp.tanh(gates)                # full-vreg EUP op
        i_g = sg[:, 0 * HP:1 * HP]          # 128-lane aligned slices (free)
        f_g = sg[:, 1 * HP:2 * HP]
        g_g = th[:, 2 * HP:3 * HP]
        o_g = sg[:, 3 * HP:4 * HP]
        c = f_g * c + i_g * g_g             # padded lanes stay exactly 0
        h = o_g * jnp.tanh(c)

    # --- SoTA head: Linear + softmax over the (padded) class lanes.
    logits = jnp.dot(h, whead_ref[...], preferred_element_type=jnp.float32)
    logits = logits + bhead_ref[...]
    m = jnp.max(logits, axis=-1, keepdims=True)
    e = jnp.exp(logits - m)                 # padded class lanes -> exp(-1e30)=0
    inv = pl.reciprocal(jnp.sum(e, axis=-1, keepdims=True), approx=True)
    out_ref[...] = e * inv                  # unmasked (8, 128) store


# ----------------------- one-time host-side weight prep -----------------------
def prepare_params(params, H, W):
    """Host-side (numpy) weight plumbing, executed ONCE outside the jitted path.

    Builds the Toeplitz-expanded conv matrix, gate-band-padded LSTM weights and
    padded head, and returns them as device arrays for the fused kernel."""
    conv_w = np.asarray(params["conv_w"], np.float32)               # (3,3,C,F)
    conv_b = np.asarray(params["conv_b"], np.float32).reshape(-1)   # (F,)
    w_ih = np.asarray(params["w_ih"], np.float32)                   # (D, 4*HID)
    w_hh = np.asarray(params["w_hh"], np.float32)                   # (HID, 4*HID)
    lstm_b = np.asarray(params["lstm_b"], np.float32).reshape(1, -1)
    head_w = np.asarray(params["head_w"], np.float32)               # (HID, NCLS)
    head_b = np.asarray(params["head_b"], np.float32).reshape(1, -1)

    KH, KW, C, F = conv_w.shape
    D = w_ih.shape[0]
    HID = w_hh.shape[0]
    NCLS = head_w.shape[1]
    HP = max(LANE, ((HID + LANE - 1) // LANE) * LANE)     # per-gate lane band
    NCP = max(LANE, ((NCLS + LANE - 1) // LANE) * LANE)   # padded class lanes

    # Toeplitz expansion: <padded flat frame> @ wconv == SAME conv, (h,w,f) flat.
    Hp, Wp = H + KH - 1, W + KW - 1
    kh, kw, hh, ww, cc, ff = np.meshgrid(
        np.arange(KH), np.arange(KW), np.arange(H), np.arange(W),
        np.arange(C), np.arange(F), indexing="ij")
    rows = ((hh + kh) * Wp + (ww + kw)) * C + cc          # padded-input flat idx
    cols = (hh * W + ww) * F + ff                         # output (h,w,f) flat idx
    wconv = np.zeros((Hp * Wp * C, H * W * F), np.float32)
    wconv[rows.ravel(), cols.ravel()] = conv_w[kh.ravel(), kw.ravel(),
                                               cc.ravel(), ff.ravel()]
    bconv = np.tile(conv_b, H * W).reshape(1, H * W * F)

    # Gate-band padding: each gate gets its own 128-lane band (zeros elsewhere).
    wih_p = np.zeros((D, 4 * HP), np.float32)
    whh_p = np.zeros((HP, 4 * HP), np.float32)
    blstm_p = np.zeros((1, 4 * HP), np.float32)
    for g in range(4):
        wih_p[:, g * HP:g * HP + HID] = w_ih[:, g * HID:(g + 1) * HID]
        whh_p[:HID, g * HP:g * HP + HID] = w_hh[:, g * HID:(g + 1) * HID]
        blstm_p[:, g * HP:g * HP + HID] = lstm_b[:, g * HID:(g + 1) * HID]

    # Padded head: zero pad rows/cols; -1e30 pad bias kills padded classes
    # under softmax so the 128-lane softmax equals the NCLS softmax.
    whead_p = np.zeros((HP, NCP), np.float32)
    whead_p[:HID, :NCLS] = head_w
    bhead_p = np.full((1, NCP), -1e30, np.float32)
    bhead_p[:, :NCLS] = head_b

    return {
        "wconv": jnp.asarray(wconv), "bconv": jnp.asarray(bconv),
        "w_ih": jnp.asarray(wih_p), "w_hh": jnp.asarray(whh_p),
        "lstm_b": jnp.asarray(blstm_p),
        "head_w": jnp.asarray(whead_p), "head_b": jnp.asarray(bhead_p),
    }


# --------------------------------- forward ------------------------------------
@functools.partial(jax.jit, static_argnames=("ncls",))
def model_forward(x_btchw, prep, *, ncls):
    """x_btchw: (B, T, C, H, W) float32 -> (B, ncls) softmax probabilities."""
    B, T, C, H, W = x_btchw.shape
    Hp, Wp = H + 2, W + 2
    Bp = ((B + SUBLANE - 1) // SUBLANE) * SUBLANE         # pad batch to 8 rows

    # Input layout plumbing only (cheap): NCHW -> time-major NHWC, pad batch
    # rows with zero frames, zero-pad spatial, one row per frame.
    x = jnp.transpose(x_btchw, (1, 0, 3, 4, 2))                     # (T,B,H,W,C)
    x = jnp.pad(x, ((0, 0), (0, Bp - B), (1, 1), (1, 1), (0, 0)))   # (T,Bp,Hp,Wp,C)
    xflat = x.reshape(T * Bp, Hp * Wp * C)

    ncls_pad = prep["head_w"].shape[1]
    vmem = pl.BlockSpec(memory_space=pltpu.MemorySpace.VMEM)
    probs_pad = pl.pallas_call(
        fused_model_kernel,
        out_shape=jax.ShapeDtypeStruct((Bp, ncls_pad), jnp.float32),
        in_specs=[vmem] * 8,
        out_specs=vmem,
    )(xflat, prep["wconv"], prep["bconv"],
      prep["w_ih"], prep["w_hh"], prep["lstm_b"],
      prep["head_w"], prep["head_b"])
    return probs_pad[:B, :ncls]


# ----------------------------- pure-JAX reference -----------------------------
def model_forward_reference(x_btchw, params):
    B, T, C, H, W = x_btchw.shape
    F = params["conv_w"].shape[-1]
    HID = params["w_hh"].shape[0]
    x = jnp.transpose(x_btchw, (1, 0, 3, 4, 2)).reshape(T * B, H, W, C)
    y = lax.conv_general_dilated(
        x, params["conv_w"], window_strides=(1, 1), padding=((1, 1), (1, 1)),
        dimension_numbers=("NHWC", "HWIO", "NHWC"))
    y = jnp.maximum(y + params["conv_b"].reshape(1, 1, 1, F), 0.0)
    feat = y.reshape(T, B, H * W * F)

    def step(carry, xt):
        h, c = carry
        g = xt @ params["w_ih"] + h @ params["w_hh"] + params["lstm_b"]
        i = jax.nn.sigmoid(g[:, :HID])
        f = jax.nn.sigmoid(g[:, HID:2 * HID])
        gg = jnp.tanh(g[:, 2 * HID:3 * HID])
        o = jax.nn.sigmoid(g[:, 3 * HID:])
        c = f * c + i * gg
        h = o * jnp.tanh(c)
        return (h, c), None

    init = (jnp.zeros((B, HID), jnp.float32), jnp.zeros((B, HID), jnp.float32))
    (h, _), _ = lax.scan(step, init, feat)
    logits = h @ params["head_w"] + params["head_b"]
    return jax.nn.softmax(logits, axis=-1)


# ---------------------------------- params ------------------------------------
def init_params(key, C=3, F=4, H=8, W=8, HID=32, NCLS=10):
    D = H * W * F
    ks = jax.random.split(key, 6)
    s = 0.05
    return {
        "conv_w": s * jax.random.normal(ks[0], (3, 3, C, F), jnp.float32),
        "conv_b": s * jax.random.normal(ks[1], (1, F), jnp.float32),
        "w_ih":   s * jax.random.normal(ks[2], (D, 4 * HID), jnp.float32),
        "w_hh":   s * jax.random.normal(ks[3], (HID, 4 * HID), jnp.float32),
        "lstm_b": s * jax.random.normal(ks[4], (1, 4 * HID), jnp.float32),
        "head_w": s * jax.random.normal(ks[5], (HID, NCLS), jnp.float32),
        "head_b": jnp.zeros((1, NCLS), jnp.float32),
    }


if __name__ == "__main__":
    B, T, C, H, W = 2, 8, 3, 8, 8
    NCLS, HID, F = 10, 32, 4

    x = jax.random.normal(jax.random.PRNGKey(0), (B, T, C, H, W), jnp.float32)
    params = init_params(jax.random.PRNGKey(42), C=C, F=F, H=H, W=W,
                         HID=HID, NCLS=NCLS)

    # One-time, host-side weight preparation (outside the jitted forward path).
    prep = prepare_params(params, H, W)

    out = jax.block_until_ready(model_forward(x, prep, ncls=NCLS))

    assert out.shape == (B, NCLS)
    assert bool(jnp.all(jnp.isfinite(out)))
    assert bool(jnp.allclose(jnp.sum(out, axis=-1), 1.0, atol=5e-3))

    ref = jax.block_until_ready(jax.jit(model_forward_reference)(x, params))
    assert bool(jnp.allclose(out, ref, atol=5e-4, rtol=5e-3)), (
        "kernel/reference mismatch: max abs diff "
        f"{float(jnp.max(jnp.abs(out - ref)))}")

    print("KERNEL_OK")
</pallas_src>

<mosaic_0001>
module attributes {stable_mosaic.version = 11 : i64} {
  func.func @fused_model_kernel(%arg0: memref<64x300xf32, #tpu.memory_space<vmem>>, %arg1: memref<300x256xf32, #tpu.memory_space<vmem>>, %arg2: memref<1x256xf32, #tpu.memory_space<vmem>>, %arg3: memref<256x512xf32, #tpu.memory_space<vmem>>, %arg4: memref<128x512xf32, #tpu.memory_space<vmem>>, %arg5: memref<1x512xf32, #tpu.memory_space<vmem>>, %arg6: memref<128x128xf32, #tpu.memory_space<vmem>>, %arg7: memref<1x128xf32, #tpu.memory_space<vmem>>, %arg8: memref<8x128xf32, #tpu.memory_space<vmem>>) attributes {dimension_semantics = [], scalar_prefetch = 0 : i64, scratch_operands = 0 : i64, tpu.core_type = #tpu.core_type<tc>} {
    %c0 = arith.constant 0 : index
    %c0_0 = arith.constant 0 : index
    %0 = vector.load %arg0[%c0, %c0_0] : memref<64x300xf32, #tpu.memory_space<vmem>>, vector<64x300xf32>
    %c0_1 = arith.constant 0 : index
    %c0_2 = arith.constant 0 : index
    %1 = vector.load %arg1[%c0_1, %c0_2] : memref<300x256xf32, #tpu.memory_space<vmem>>, vector<300x256xf32>
    %cst = arith.constant dense<0.000000e+00> : vector<64x256xf32>
    %2 = tpu.matmul %0, %1, %cst {dimension_numbers = #tpu.dot_dimension_numbers<[1], [0], [0], [1], [0, 0, 1, 1], [], []>} : vector<64x300xf32>, vector<300x256xf32>, vector<64x256xf32> -> vector<64x256xf32>
    %c0_3 = arith.constant 0 : index
    %c0_4 = arith.constant 0 : index
    %3 = vector.load %arg2[%c0_3, %c0_4] : memref<1x256xf32, #tpu.memory_space<vmem>>, vector<1x256xf32>
    %4 = vector.broadcast %3 : vector<1x256xf32> to vector<64x256xf32>
    %5 = arith.addf %2, %4 : vector<64x256xf32>
    %cst_5 = arith.constant 0.000000e+00 : f32
    %6 = vector.broadcast %cst_5 : f32 to vector<64x256xf32>
    %7 = arith.maximumf %5, %6 : vector<64x256xf32>
    %c0_6 = arith.constant 0 : index
    %c0_7 = arith.constant 0 : index
    %8 = vector.load %arg3[%c0_6, %c0_7] : memref<256x512xf32, #tpu.memory_space<vmem>>, vector<256x512xf32>
    %cst_8 = arith.constant dense<0.000000e+00> : vector<64x512xf32>
    %9 = tpu.matmul %7, %8, %cst_8 {dimension_numbers = #tpu.dot_dimension_numbers<[1], [0], [0], [1], [0, 0, 1, 1], [], []>} : vector<64x256xf32>, vector<256x512xf32>, vector<64x512xf32> -> vector<64x512xf32>
    %c0_9 = arith.constant 0 : index
    %c0_10 = arith.constant 0 : index
    %10 = vector.load %arg5[%c0_9, %c0_10] : memref<1x512xf32, #tpu.memory_space<vmem>>, vector<1x512xf32>
    %11 = vector.broadcast %10 : vector<1x512xf32> to vector<64x512xf32>
    %12 = arith.addf %9, %11 : vector<64x512xf32>
    %c0_11 = arith.constant 0 : index
    %c0_12 = arith.constant 0 : index
    %13 = vector.load %arg4[%c0_11, %c0_12] : memref<128x512xf32, #tpu.memory_space<vmem>>, vector<128x512xf32>
    %cst_13 = arith.constant 0.000000e+00 : f32
    %14 = vector.broadcast %cst_13 : f32 to vector<8x128xf32>
    %cst_14 = arith.constant 0.000000e+00 : f32
    %15 = vector.broadcast %cst_14 : f32 to vector<8x128xf32>
    %16 = vector.extract_strided_slice %12 {offsets = [0, 0], sizes = [8, 512], strides = [1, 1]} : vector<64x512xf32> to vector<8x512xf32>
    %cst_15 = arith.constant dense<0.000000e+00> : vector<8x512xf32>
    %17 = tpu.matmul %14, %13, %cst_15 {dimension_numbers = #tpu.dot_dimension_numbers<[1], [0], [0], [1], [0, 0, 1, 1], [], []>} : vector<8x128xf32>, vector<128x512xf32>, vector<8x512xf32> -> vector<8x512xf32>
    %18 = arith.addf %16, %17 : vector<8x512xf32>
    %19 = arith.negf %18 : vector<8x512xf32>
    %20 = math.exp %19 : vector<8x512xf32>
    %cst_16 = arith.constant 1.000000e+00 : f32
    %21 = vector.broadcast %cst_16 : f32 to vector<8x512xf32>
    %22 = arith.addf %21, %20 : vector<8x512xf32>
    %23 = arith.divf %21, %22 : vector<8x512xf32>
    %24 = math.tanh %18 : vector<8x512xf32>
    %25 = vector.extract_strided_slice %23 {offsets = [0, 0], sizes = [8, 128], strides = [1, 1]} : vector<8x512xf32> to vector<8x128xf32>
    %26 = vector.extract_strided_slice %23 {offsets = [0, 128], sizes = [8, 128], strides = [1, 1]} : vector<8x512xf32> to vector<8x128xf32>
    %27 = vector.extract_strided_slice %24 {offsets = [0, 256], sizes = [8, 128], strides = [1, 1]} : vector<8x512xf32> to vector<8x128xf32>
    %28 = vector.extract_strided_slice %23 {offsets = [0, 384], sizes = [8, 128], strides = [1, 1]} : vector<8x512xf32> to vector<8x128xf32>
    %29 = arith.mulf %26, %15 : vector<8x128xf32>
    %30 = arith.mulf %25, %27 : vector<8x128xf32>
    %31 = arith.addf %29, %30 : vector<8x128xf32>
    %32 = math.tanh %31 : vector<8x128xf32>
    %33 = arith.mulf %28, %32 : vector<8x128xf32>
    %34 = vector.extract_strided_slice %12 {offsets = [8, 0], sizes = [8, 512], strides = [1, 1]} : vector<64x512xf32> to vector<8x512xf32>
    %cst_17 = arith.constant dense<0.000000e+00> : vector<8x512xf32>
    %35 = tpu.matmul %33, %13, %cst_17 {dimension_numbers = #tpu.dot_dimension_numbers<[1], [0], [0], [1], [0, 0, 1, 1], [], []>} : vector<8x128xf32>, vector<128x512xf32>, vector<8x512xf32> -> vector<8x512xf32>
    %36 = arith.addf %34, %35 : vector<8x512xf32>
    %37 = arith.negf %36 : vector<8x512xf32>
    %38 = math.exp %37 : vector<8x512xf32>
    %cst_18 = arith.constant 1.000000e+00 : f32
    %39 = vector.broadcast %cst_18 : f32 to vector<8x512xf32>
    %40 = arith.addf %39, %38 : vector<8x512xf32>
    %41 = arith.divf %39, %40 : vector<8x512xf32>
    %42 = math.tanh %36 : vector<8x512xf32>
    %43 = vector.extract_strided_slice %41 {offsets = [0, 0], sizes = [8, 128], strides = [1, 1]} : vector<8x512xf32> to vector<8x128xf32>
    %44 = vector.extract_strided_slice %41 {offsets = [0, 128], sizes = [8, 128], strides = [1, 1]} : vector<8x512xf32> to vector<8x128xf32>
    %45 = vector.extract_strided_slice %42 {offsets = [0, 256], sizes = [8, 128], strides = [1, 1]} : vector<8x512xf32> to vector<8x128xf32>
    %46 = vector.extract_strided_slice %41 {offsets = [0, 384], sizes = [8, 128], strides = [1, 1]} : vector<8x512xf32> to vector<8x128xf32>
    %47 = arith.mulf %44, %31 : vector<8x128xf32>
    %48 = arith.mulf %43, %45 : vector<8x128xf32>
    %49 = arith.addf %47, %48 : vector<8x128xf32>
    %50 = math.tanh %49 : vector<8x128xf32>
    %51 = arith.mulf %46, %50 : vector<8x128xf32>
    %52 = vector.extract_strided_slice %12 {offsets = [16, 0], sizes = [8, 512], strides = [1, 1]} : vector<64x512xf32> to vector<8x512xf32>
    %cst_19 = arith.constant dense<0.000000e+00> : vector<8x512xf32>
    %53 = tpu.matmul %51, %13, %cst_19 {dimension_numbers = #tpu.dot_dimension_numbers<[1], [0], [0], [1], [0, 0, 1, 1], [], []>} : vector<8x128xf32>, vector<128x512xf32>, vector<8x512xf32> -> vector<8x512xf32>
    %54 = arith.addf %52, %53 : vector<8x512xf32>
    %55 = arith.negf %54 : vector<8x512xf32>
    %56 = math.exp %55 : vector<8x512xf32>
    %cst_20 = arith.constant 1.000000e+00 : f32
    %57 = vector.broadcast %cst_20 : f32 to vector<8x512xf32>
    %58 = arith.addf %57, %56 : vector<8x512xf32>
    %59 = arith.divf %57, %58 : vector<8x512xf32>
    %60 = math.tanh %54 : vector<8x512xf32>
    %61 = vector.extract_strided_slice %59 {offsets = [0, 0], sizes = [8, 128], strides = [1, 1]} : vector<8x512xf32> to vector<8x128xf32>
    %62 = vector.extract_strided_slice %59 {offsets = [0, 128], sizes = [8, 128], strides = [1, 1]} : vector<8x512xf32> to vector<8x128xf32>
    %63 = vector.extract_strided_slice %60 {offsets = [0, 256], sizes = [8, 128], strides = [1, 1]} : vector<8x512xf32> to vector<8x128xf32>
    %64 = vector.extract_strided_slice %59 {offsets = [0, 384], sizes = [8, 128], strides = [1, 1]} : vector<8x512xf32> to vector<8x128xf32>
    %65 = arith.mulf %62, %49 : vector<8x128xf32>
    %66 = arith.mulf %61, %63 : vector<8x128xf32>
    %67 = arith.addf %65, %66 : vector<8x128xf32>
    %68 = math.tanh %67 : vector<8x128xf32>
    %69 = arith.mulf %64, %68 : vector<8x128xf32>
    %70 = vector.extract_strided_slice %12 {offsets = [24, 0], sizes = [8, 512], strides = [1, 1]} : vector<64x512xf32> to vector<8x512xf32>
    %cst_21 = arith.constant dense<0.000000e+00> : vector<8x512xf32>
    %71 = tpu.matmul %69, %13, %cst_21 {dimension_numbers = #tpu.dot_dimension_numbers<[1], [0], [0], [1], [0, 0, 1, 1], [], []>} : vector<8x128xf32>, vector<128x512xf32>, vector<8x512xf32> -> vector<8x512xf32>
    %72 = arith.addf %70, %71 : vector<8x512xf32>
    %73 = arith.negf %72 : vector<8x512xf32>
    %74 = math.exp %73 : vector<8x512xf32>
    %cst_22 = arith.constant 1.000000e+00 : f32
    %75 = vector.broadcast %cst_22 : f32 to vector<8x512xf32>
    %76 = arith.addf %75, %74 : vector<8x512xf32>
    %77 = arith.divf %75, %76 : vector<8x512xf32>
    %78 = math.tanh %72 : vector<8x512xf32>
    %79 = vector.extract_strided_slice %77 {offsets = [0, 0], sizes = [8, 128], strides = [1, 1]} : vector<8x512xf32> to vector<8x128xf32>
    %80 = vector.extract_strided_slice %77 {offsets = [0, 128], sizes = [8, 128], strides = [1, 1]} : vector<8x512xf32> to vector<8x128xf32>
    %81 = vector.extract_strided_slice %78 {offsets = [0, 256], sizes = [8, 128], strides = [1, 1]} : vector<8x512xf32> to vector<8x128xf32>
    %82 = vector.extract_strided_slice %77 {offsets = [0, 384], sizes = [8, 128], strides = [1, 1]} : vector<8x512xf32> to vector<8x128xf32>
    %83 = arith.mulf %80, %67 : vector<8x128xf32>
    %84 = arith.mulf %79, %81 : vector<8x128xf32>
    %85 = arith.addf %83, %84 : vector<8x128xf32>
    %86 = math.tanh %85 : vector<8x128xf32>
    %87 = arith.mulf %82, %86 : vector<8x128xf32>
    %88 = vector.extract_strided_slice %12 {offsets = [32, 0], sizes = [8, 512], strides = [1, 1]} : vector<64x512xf32> to vector<8x512xf32>
    %cst_23 = arith.constant dense<0.000000e+00> : vector<8x512xf32>
    %89 = tpu.matmul %87, %13, %cst_23 {dimension_numbers = #tpu.dot_dimension_numbers<[1], [0], [0], [1], [0, 0, 1, 1], [], []>} : vector<8x128xf32>, vector<128x512xf32>, vector<8x512xf32> -> vector<8x512xf32>
    %90 = arith.addf %88, %89 : vector<8x512xf32>
    %91 = arith.negf %90 : vector<8x512xf32>
    %92 = math.exp %91 : vector<8x512xf32>
    %cst_24 = arith.constant 1.000000e+00 : f32
    %93 = vector.broadcast %cst_24 : f32 to vector<8x512xf32>
    %94 = arith.addf %93, %92 : vector<8x512xf32>
    %95 = arith.divf %93, %94 : vector<8x512xf32>
    %96 = math.tanh %90 : vector<8x512xf32>
    %97 = vector.extract_strided_slice %95 {offsets = [0, 0], sizes = [8, 128], strides = [1, 1]} : vector<8x512xf32> to vector<8x128xf32>
    %98 = vector.extract_strided_slice %95 {offsets = [0, 128], sizes = [8, 128], strides = [1, 1]} : vector<8x512xf32> to vector<8x128xf32>
    %99 = vector.extract_strided_slice %96 {offsets = [0, 256], sizes = [8, 128], strides = [1, 1]} : vector<8x512xf32> to vector<8x128xf32>
    %100 = vector.extract_strided_slice %95 {offsets = [0, 384], sizes = [8, 128], strides = [1, 1]} : vector<8x512xf32> to vector<8x128xf32>
    %101 = arith.mulf %98, %85 : vector<8x128xf32>
    %102 = arith.mulf %97, %99 : vector<8x128xf32>
    %103 = arith.addf %101, %102 : vector<8x128xf32>
    %104 = math.tanh %103 : vector<8x128xf32>
    %105 = arith.mulf %100, %104 : vector<8x128xf32>
    %106 = vector.extract_strided_slice %12 {offsets = [40, 0], sizes = [8, 512], strides = [1, 1]} : vector<64x512xf32> to vector<8x512xf32>
    %cst_25 = arith.constant dense<0.000000e+00> : vector<8x512xf32>
    %107 = tpu.matmul %105, %13, %cst_25 {dimension_numbers = #tpu.dot_dimension_numbers<[1], [0], [0], [1], [0, 0, 1, 1], [], []>} : vector<8x128xf32>, vector<128x512xf32>, vector<8x512xf32> -> vector<8x512xf32>
    %108 = arith.addf %106, %107 : vector<8x512xf32>
    %109 = arith.negf %108 : vector<8x512xf32>
    %110 = math.exp %109 : vector<8x512xf32>
    %cst_26 = arith.constant 1.000000e+00 : f32
    %111 = vector.broadcast %cst_26 : f32 to vector<8x512xf32>
    %112 = arith.addf %111, %110 : vector<8x512xf32>
    %113 = arith.divf %111, %112 : vector<8x512xf32>
    %114 = math.tanh %108 : vector<8x512xf32>
    %115 = vector.extract_strided_slice %113 {offsets = [0, 0], sizes = [8, 128], strides = [1, 1]} : vector<8x512xf32> to vector<8x128xf32>
    %116 = vector.extract_strided_slice %113 {offsets = [0, 128], sizes = [8, 128], strides = [1, 1]} : vector<8x512xf32> to vector<8x128xf32>
    %117 = vector.extract_strided_slice %114 {offsets = [0, 256], sizes = [8, 128], strides = [1, 1]} : vector<8x512xf32> to vector<8x128xf32>
    %118 = vector.extract_strided_slice %113 {offsets = [0, 384], sizes = [8, 128], strides = [1, 1]} : vector<8x512xf32> to vector<8x128xf32>
    %119 = arith.mulf %116, %103 : vector<8x128xf32>
    %120 = arith.mulf %115, %117 : vector<8x128xf32>
    %121 = arith.addf %119, %120 : vector<8x128xf32>
    %122 = math.tanh %121 : vector<8x128xf32>
    %123 = arith.mulf %118, %122 : vector<8x128xf32>
    %124 = vector.extract_strided_slice %12 {offsets = [48, 0], sizes = [8, 512], strides = [1, 1]} : vector<64x512xf32> to vector<8x512xf32>
    %cst_27 = arith.constant dense<0.000000e+00> : vector<8x512xf32>
    %125 = tpu.matmul %123, %13, %cst_27 {dimension_numbers = #tpu.dot_dimension_numbers<[1], [0], [0], [1], [0, 0, 1, 1], [], []>} : vector<8x128xf32>, vector<128x512xf32>, vector<8x512xf32> -> vector<8x512xf32>
    %126 = arith.addf %124, %125 : vector<8x512xf32>
    %127 = arith.negf %126 : vector<8x512xf32>
    %128 = math.exp %127 : vector<8x512xf32>
    %cst_28 = arith.constant 1.000000e+00 : f32
    %129 = vector.broadcast %cst_28 : f32 to vector<8x512xf32>
    %130 = arith.addf %129, %128 : vector<8x512xf32>
    %131 = arith.divf %129, %130 : vector<8x512xf32>
    %132 = math.tanh %126 : vector<8x512xf32>
    %133 = vector.extract_strided_slice %131 {offsets = [0, 0], sizes = [8, 128], strides = [1, 1]} : vector<8x512xf32> to vector<8x128xf32>
    %134 = vector.extract_strided_slice %131 {offsets = [0, 128], sizes = [8, 128], strides = [1, 1]} : vector<8x512xf32> to vector<8x128xf32>
    %135 = vector.extract_strided_slice %132 {offsets = [0, 256], sizes = [8, 128], strides = [1, 1]} : vector<8x512xf32> to vector<8x128xf32>
    %136 = vector.extract_strided_slice %131 {offsets = [0, 384], sizes = [8, 128], strides = [1, 1]} : vector<8x512xf32> to vector<8x128xf32>
    %137 = arith.mulf %134, %121 : vector<8x128xf32>
    %138 = arith.mulf %133, %135 : vector<8x128xf32>
    %139 = arith.addf %137, %138 : vector<8x128xf32>
    %140 = math.tanh %139 : vector<8x128xf32>
    %141 = arith.mulf %136, %140 : vector<8x128xf32>
    %142 = vector.extract_strided_slice %12 {offsets = [56, 0], sizes = [8, 512], strides = [1, 1]} : vector<64x512xf32> to vector<8x512xf32>
    %cst_29 = arith.constant dense<0.000000e+00> : vector<8x512xf32>
    %143 = tpu.matmul %141, %13, %cst_29 {dimension_numbers = #tpu.dot_dimension_numbers<[1], [0], [0], [1], [0, 0, 1, 1], [], []>} : vector<8x128xf32>, vector<128x512xf32>, vector<8x512xf32> -> vector<8x512xf32>
    %144 = arith.addf %142, %143 : vector<8x512xf32>
    %145 = arith.negf %144 : vector<8x512xf32>
    %146 = math.exp %145 : vector<8x512xf32>
    %cst_30 = arith.constant 1.000000e+00 : f32
    %147 = vector.broadcast %cst_30 : f32 to vector<8x512xf32>
    %148 = arith.addf %147, %146 : vector<8x512xf32>
    %149 = arith.divf %147, %148 : vector<8x512xf32>
    %150 = math.tanh %144 : vector<8x512xf32>
    %151 = vector.extract_strided_slice %149 {offsets = [0, 0], sizes = [8, 128], strides = [1, 1]} : vector<8x512xf32> to vector<8x128xf32>
    %152 = vector.extract_strided_slice %149 {offsets = [0, 128], sizes = [8, 128], strides = [1, 1]} : vector<8x512xf32> to vector<8x128xf32>
    %153 = vector.extract_strided_slice %150 {offsets = [0, 256], sizes = [8, 128], strides = [1, 1]} : vector<8x512xf32> to vector<8x128xf32>
    %154 = vector.extract_strided_slice %149 {offsets = [0, 384], sizes = [8, 128], strides = [1, 1]} : vector<8x512xf32> to vector<8x128xf32>
    %155 = arith.mulf %152, %139 : vector<8x128xf32>
    %156 = arith.mulf %151, %153 : vector<8x128xf32>
    %157 = arith.addf %155, %156 : vector<8x128xf32>
    %158 = math.tanh %157 : vector<8x128xf32>
    %159 = arith.mulf %154, %158 : vector<8x128xf32>
    %c0_31 = arith.constant 0 : index
    %c0_32 = arith.constant 0 : index
    %160 = vector.load %arg6[%c0_31, %c0_32] : memref<128x128xf32, #tpu.memory_space<vmem>>, vector<128x128xf32>
    %cst_33 = arith.constant dense<0.000000e+00> : vector<8x128xf32>
    %161 = tpu.matmul %159, %160, %cst_33 {dimension_numbers = #tpu.dot_dimension_numbers<[1], [0], [0], [1], [0, 0, 1, 1], [], []>} : vector<8x128xf32>, vector<128x128xf32>, vector<8x128xf32> -> vector<8x128xf32>
    %c0_34 = arith.constant 0 : index
    %c0_35 = arith.constant 0 : index
    %162 = vector.load %arg7[%c0_34, %c0_35] : memref<1x128xf32, #tpu.memory_space<vmem>>, vector<1x128xf32>
    %163 = vector.broadcast %162 : vector<1x128xf32> to vector<8x128xf32>
    %164 = arith.addf %161, %163 : vector<8x128xf32>
    %cst_36 = arith.constant dense<0xFF800000> : vector<8xf32>
    %165 = vector.multi_reduction <maximumf>, %164, %cst_36 [1] : vector<8x128xf32> to vector<8xf32>
    %166 = vector.shape_cast %165 : vector<8xf32> to vector<8x1xf32>
    %167 = vector.broadcast %166 : vector<8x1xf32> to vector<8x128xf32>
    %168 = arith.subf %164, %167 : vector<8x128xf32>
    %169 = math.exp %168 : vector<8x128xf32>
    %cst_37 = arith.constant dense<0.000000e+00> : vector<8xf32>
    %170 = vector.multi_reduction <add>, %169, %cst_37 [1] : vector<8x128xf32> to vector<8xf32>
    %171 = vector.shape_cast %170 : vector<8xf32> to vector<8x1xf32>
    %172 = tpu.reciprocal %171 {approx = true} : vector<8x1xf32> -> vector<8x1xf32>
    %173 = vector.broadcast %172 : vector<8x1xf32> to vector<8x128xf32>
    %174 = arith.mulf %169, %173 : vector<8x128xf32>
    %c0_38 = arith.constant 0 : index
    %c0_39 = arith.constant 0 : index
    %175 = vector.load %arg8[%c0_38, %c0_39] : memref<8x128xf32, #tpu.memory_space<vmem>>, vector<8x128xf32>
    tpu.vector_store %arg8[%c0_38, %c0_39], %174 {strides = array<i32>} : memref<8x128xf32, #tpu.memory_space<vmem>>, vector<8x128xf32>,
    return
  }
}

</mosaic_0001>

<llo_original>
// kernel: model_forward.1
$region0: #{model_forward.1}
  #allocation0 [shape = 'u32[]', space=smem, size = 0x4, offset = 0x4, fixed_abs, tag = 'smem constant byte address 0x4 - core index']
  #allocation1 [shape = 'u32[72,128]{1,0:T(1,128)}', space=vmem, size = 0x9000, scoped, tag = 'internal scratch']
  %s0 = inlined_call_operand.vmem [shape: f32[64,300], index: 0, kind: input, shape index: {}]
  %s1 = inlined_call_operand.vmem [shape: f32[300,256], index: 1, kind: input, shape index: {}]
  %s2 = inlined_call_operand.vmem [shape: f32[1,256], index: 2, kind: input, shape index: {}]
  %s3 = inlined_call_operand.vmem [shape: f32[256,512], index: 3, kind: input, shape index: {}]
  %s4 = inlined_call_operand.vmem [shape: f32[128,512], index: 4, kind: input, shape index: {}]
  %s5 = inlined_call_operand.vmem [shape: f32[1,512], index: 5, kind: input, shape index: {}]
  %s6 = inlined_call_operand.vmem [shape: f32[128,128], index: 6, kind: input, shape index: {}]
  %s7 = inlined_call_operand.vmem [shape: f32[1,128], index: 7, kind: input, shape index: {}]
  %s8 = inlined_call_operand.vmem [shape: f32[8,128], index: 8, kind: output, shape index: {}]
  %s9 = sld [smem:[#allocation0]]
  $region42: #{model_forward.1} parent=0
    _
  %s11 = ssub.s32 1, %s9
  %s12 = scalar_select 0, %s11, %s9
  // Predicated region
  $region2: #{model_forward.1} parent=0 // pred_check
    _
  $region3: #{model_forward.1} parent=0 // pred_check_branch
    %14 = sbr.rel (0) target = $region5
  $region4: #{model_forward.1} parent=0 // pred_region
    _
  $region5: #{model_forward.1} parent=0 // pred_fallthru
    _
  // Predicated region
  $region6: #{model_forward.1} parent=0 // pred_check
    _
  $region7: #{model_forward.1} parent=0 // pred_check_branch
    %16 = sbr.rel (0) target = $region9
  $region8: #{model_forward.1} parent=0 // pred_region
    _
  $region9: #{model_forward.1} parent=0 // pred_fallthru
    _
  // Predicated region
  $region10: #{model_forward.1} parent=0 // pred_check
    _
  $region11: #{model_forward.1} parent=0 // pred_check_branch
    %18 = sbr.rel (0) target = $region13
  $region12: #{model_forward.1} parent=0 // pred_region
    _
  $region13: #{model_forward.1} parent=0 // pred_fallthru
    _
  // Predicated region
  $region14: #{model_forward.1} parent=0 // pred_check
    _
  $region15: #{model_forward.1} parent=0 // pred_check_branch
    %20 = sbr.rel (0) target = $region17
  $region16: #{model_forward.1} parent=0 // pred_region
    _
  $region17: #{model_forward.1} parent=0 // pred_fallthru
    _
  // Predicated region
  $region18: #{model_forward.1} parent=0 // pred_check
    _
  $region19: #{model_forward.1} parent=0 // pred_check_branch
    %22 = sbr.rel (0) target = $region21
  $region20: #{model_forward.1} parent=0 // pred_region
    _
  $region21: #{model_forward.1} parent=0 // pred_fallthru
    _
  // Predicated region
  $region22: #{model_forward.1} parent=0 // pred_check
    _
  $region23: #{model_forward.1} parent=0 // pred_check_branch
    %24 = sbr.rel (0) target = $region25
  $region24: #{model_forward.1} parent=0 // pred_region
    _
  $region25: #{model_forward.1} parent=0 // pred_fallthru
    _
  // Predicated region
  $region26: #{model_forward.1} parent=0 // pred_check
    _
  $region27: #{model_forward.1} parent=0 // pred_check_branch
    %26 = sbr.rel (0) target = $region29
  $region28: #{model_forward.1} parent=0 // pred_region
    _
  $region29: #{model_forward.1} parent=0 // pred_fallthru
    _
  // Predicated region
  $region30: #{model_forward.1} parent=0 // pred_check
    _
  $region31: #{model_forward.1} parent=0 // pred_check_branch
    %28 = sbr.rel (0) target = $region33
  $region32: #{model_forward.1} parent=0 // pred_region
    _
  $region33: #{model_forward.1} parent=0 // pred_fallthru
    _
  %v29 = vld [vmem:[%s0] sm:$0xff]
  %v30 = vld [vmem:[%s0 + $0x8] sm:$0xff]
  %v31 = vld [vmem:[%s0 + $0x10] sm:$0xff]
  %v32 = vld [vmem:[%s0 + $0x18] sm:$0xff]
  %v33 = vld [vmem:[%s0 + $0x20] sm:$0xff]
  %v34 = vld [vmem:[%s0 + $0x28] sm:$0xff]
  %v35 = vld [vmem:[%s0 + $0x30] sm:$0xff]
  %v36 = vld [vmem:[%s0 + $0x38] sm:$0xff]
  %v37 = vld [vmem:[%s0 + $0x40] sm:$0xff]
  %v38 = vld [vmem:[%s0 + $0x48] sm:$0xff]
  %v39 = vld [vmem:[%s0 + $0x50] sm:$0xff]
  %v40 = vld [vmem:[%s0 + $0x58] sm:$0xff]
  %v41 = vld [vmem:[%s0 + $0x60] sm:$0xff]
  %v42 = vld [vmem:[%s0 + $0x68] sm:$0xff]
  %v43 = vld [vmem:[%s0 + $0x70] sm:$0xff]
  %v44 = vld [vmem:[%s0 + $0x78] sm:$0xff]
  %v45 = vld [vmem:[%s0 + $0x80] sm:$0xff]
  %v46 = vld [vmem:[%s0 + $0x88] sm:$0xff]
  %v47 = vld [vmem:[%s0 + $0x90] sm:$0xff]
  %v48 = vld [vmem:[%s0 + $0x98] sm:$0xff]
  %v49 = vld [vmem:[%s0 + $0xa0] sm:$0xff]
  %v50 = vld [vmem:[%s0 + $0xa8] sm:$0xff]
  %v51 = vld [vmem:[%s0 + $0xb0] sm:$0xff]
  %v52 = vld [vmem:[%s0 + $0xb8] sm:$0xff]
  %v53 = vld [vmem:[%s1] sm:$0xff]
  %v54 = vld [vmem:[%s1 + $0x8] sm:$0xff]
  %v55 = vld [vmem:[%s1 + $0x10] sm:$0xff]
  %v56 = vld [vmem:[%s1 + $0x18] sm:$0xff]
  %v57 = vld [vmem:[%s1 + $0x20] sm:$0xff]
  %v58 = vld [vmem:[%s1 + $0x28] sm:$0xff]
  %v59 = vld [vmem:[%s1 + $0x30] sm:$0xff]
  %v60 = vld [vmem:[%s1 + $0x38] sm:$0xff]
  %v61 = vld [vmem:[%s1 + $0x40] sm:$0xff]
  %v62 = vld [vmem:[%s1 + $0x48] sm:$0xff]
  %v63 = vld [vmem:[%s1 + $0x50] sm:$0xff]
  %v64 = vld [vmem:[%s1 + $0x58] sm:$0xff]
  %v65 = vld [vmem:[%s1 + $0x60] sm:$0xff]
  %v66 = vld [vmem:[%s1 + $0x68] sm:$0xff]
  %v67 = vld [vmem:[%s1 + $0x70] sm:$0xff]
  %v68 = vld [vmem:[%s1 + $0x78] sm:$0xff]
  %v69 = vld [vmem:[%s1 + $0x80] sm:$0xff]
  %v70 = vld [vmem:[%s1 + $0x88] sm:$0xff]
  %v71 = vld [vmem:[%s1 + $0x90] sm:$0xff]
  %v72 = vld [vmem:[%s1 + $0x98] sm:$0xff]
  %v73 = vld [vmem:[%s1 + $0xa0] sm:$0xff]
  %v74 = vld [vmem:[%s1 + $0xa8] sm:$0xff]
  %v75 = vld [vmem:[%s1 + $0xb0] sm:$0xff]
  %v76 = vld [vmem:[%s1 + $0xb8] sm:$0xff]
  %v77 = vld [vmem:[%s1 + $0xc0] sm:$0xff]
  %v78 = vld [vmem:[%s1 + $0xc8] sm:$0xff]
  %v79 = vld [vmem:[%s1 + $0xd0] sm:$0xff]
  %v80 = vld [vmem:[%s1 + $0xd8] sm:$0xff]
  %v81 = vld [vmem:[%s1 + $0xe0] sm:$0xff]
  %v82 = vld [vmem:[%s1 + $0xe8] sm:$0xff]
  %v83 = vld [vmem:[%s1 + $0xf0] sm:$0xff]
  %v84 = vld [vmem:[%s1 + $0xf8] sm:$0xff]
  %v85 = vld [vmem:[%s1 + $0x100] sm:$0xff]
  %v86 = vld [vmem:[%s1 + $0x108] sm:$0xff]
  %v87 = vld [vmem:[%s1 + $0x110] sm:$0xff]
  %v88 = vld [vmem:[%s1 + $0x118] sm:$0xff]
  %v89 = vld [vmem:[%s1 + $0x120] sm:$0xff]
  %v90 = vld [vmem:[%s1 + $0x128] sm:$0xff]
  %v91 = vld [vmem:[%s1 + $0x130] sm:$0xff]
  %v92 = vld [vmem:[%s1 + $0x138] sm:$0xff]
  %v93 = vld [vmem:[%s1 + $0x140] sm:$0xff]
  %v94 = vld [vmem:[%s1 + $0x148] sm:$0xff]
  %v95 = vld [vmem:[%s1 + $0x150] sm:$0xff]
  %v96 = vld [vmem:[%s1 + $0x158] sm:$0xff]
  %v97 = vld [vmem:[%s1 + $0x160] sm:$0xff]
  %v98 = vld [vmem:[%s1 + $0x168] sm:$0xff]
  %v99 = vld [vmem:[%s1 + $0x170] sm:$0xff]
  %v100 = vld [vmem:[%s1 + $0x178] sm:$0xff]
  %v101 = vld [vmem:[%s1 + $0x180] sm:$0xff]
  %v102 = vld [vmem:[%s1 + $0x188] sm:$0xff]
  %v103 = vld [vmem:[%s1 + $0x190] sm:$0xff]
  %v104 = vld [vmem:[%s1 + $0x198] sm:$0xff]
  %v105 = vld [vmem:[%s1 + $0x1a0] sm:$0xff]
  %v106 = vld [vmem:[%s1 + $0x1a8] sm:$0xff]
  %v107 = vld [vmem:[%s1 + $0x1b0] sm:$0xff]
  %v108 = vld [vmem:[%s1 + $0x1b8] sm:$0xff]
  %v109 = vld [vmem:[%s1 + $0x1c0] sm:$0xff]
  %v110 = vld [vmem:[%s1 + $0x1c8] sm:$0xff]
  %v111 = vld [vmem:[%s1 + $0x1d0] sm:$0xff]
  %v112 = vld [vmem:[%s1 + $0x1d8] sm:$0xff]
  %v113 = vld [vmem:[%s1 + $0x1e0] sm:$0xff]
  %v114 = vld [vmem:[%s1 + $0x1e8] sm:$0xff]
  %v115 = vld [vmem:[%s1 + $0x1f0] sm:$0xff]
  %v116 = vld [vmem:[%s1 + $0x1f8] sm:$0xff]
  %v117 = vld [vmem:[%s1 + $0x200] sm:$0xff]
  %v118 = vld [vmem:[%s1 + $0x208] sm:$0xff]
  %v119 = vld [vmem:[%s1 + $0x210] sm:$0xff]
  %v120 = vld [vmem:[%s1 + $0x218] sm:$0xff]
  %v121 = vld [vmem:[%s1 + $0x220] sm:$0xff]
  %v122 = vld [vmem:[%s1 + $0x228] sm:$0xff]
  %v123 = vld [vmem:[%s1 + $0x230] sm:$0xff]
  %v124 = vld [vmem:[%s1 + $0x238] sm:$0xff]
  %v125 = vld [vmem:[%s1 + $0x240] sm:$0xff]
  %v126 = vld [vmem:[%s1 + $0x248] sm:$0xff]
  %v127 = vld [vmem:[%s1 + $0x250] sm:$0xf]
  %v128 = vld [vmem:[%s1 + $0x258] sm:$0xf]
  %v129 = vld [vmem:[%s2] sm:$0x3]
  %v131 = vperm.slane %v129, 0
  %v132 = vperm.slane %v129, 1
  %vm135 = vcmask 359424
  %v137 = vsel %vm135, %v31, 0
  %v140 = vsel %vm135, %v34, 0
  %v143 = vsel %vm135, %v37, 0
  %v146 = vsel %vm135, %v40, 0
  %v149 = vsel %vm135, %v43, 0
  %v152 = vsel %vm135, %v46, 0
  %v155 = vsel %vm135, %v49, 0
  %v158 = vsel %vm135, %v52, 0
  %vm160 = vcmask 1043456
  %v162 = vsel %vm160, %v127, 0
  %v165 = vsel %vm160, %v128, 0
  %167 = vmatpush.msra.mxu0 %v83
  %168 = vmatpush.msra.mxu0 %v81
  %169 = vmatpush.msra.mxu0 %v79
  %170 = vmatpush.msra.mxu0 %v77
  %171 = vmatpush.msra.mxu0 %v75
  %172 = vmatpush.msra.mxu0 %v73
  %173 = vmatpush.msra.mxu0 %v71
  %174 = vmatpush.msra.mxu0 %v69
  %175 = vmatpush.msra.mxu0 %v67
  %176 = vmatpush.msra.mxu0 %v65
  %177 = vmatpush.msra.mxu0 %v63
  %178 = vmatpush.msra.mxu0 %v61
  %179 = vmatpush.msra.mxu0 %v59
  %180 = vmatpush.msra.mxu0 %v57
  %181 = vmatpush.msra.mxu0 %v55
  %182 = vmatpush.msra.mxu0 %v53
  %183 = vmatmul.f32.gmra.mxu0 %v29
  %v184 = vpop.f32.mrf.mxu0
  %v185 = vadd.f32 %v131, %v184
  %186 = vmatmul.f32.gmra.mxu0 %v32
  %v187 = vpop.f32.mrf.mxu0
  %v188 = vadd.f32 %v131, %v187
  %189 = vmatmul.f32.gmra.mxu0 %v35
  %v190 = vpop.f32.mrf.mxu0
  %v191 = vadd.f32 %v131, %v190
  %192 = vmatmul.f32.gmra.mxu0 %v38
  %v193 = vpop.f32.mrf.mxu0
  %v194 = vadd.f32 %v131, %v193
  %195 = vmatmul.f32.gmra.mxu0 %v41
  %v196 = vpop.f32.mrf.mxu0
  %v197 = vadd.f32 %v131, %v196
  %198 = vmatmul.f32.gmra.mxu0 %v44
  %v199 = vpop.f32.mrf.mxu0
  %v200 = vadd.f32 %v131, %v199
  %201 = vmatmul.f32.gmra.mxu0 %v47
  %v202 = vpop.f32.mrf.mxu0
  %v203 = vadd.f32 %v131, %v202
  %204 = vmatmul.f32.gmra.mxu0 %v50
  %v205 = vpop.f32.mrf.mxu0
  %v206 = vadd.f32 %v131, %v205
  %207 = vdwg.mxu0
  %208 = vmatpush.msra.mxu0 %v115
  %209 = vmatpush.msra.mxu0 %v113
  %210 = vmatpush.msra.mxu0 %v111
  %211 = vmatpush.msra.mxu0 %v109
  %212 = vmatpush.msra.mxu0 %v107
  %213 = vmatpush.msra.mxu0 %v105
  %214 = vmatpush.msra.mxu0 %v103
  %215 = vmatpush.msra.mxu0 %v101
  %216 = vmatpush.msra.mxu0 %v99
  %217 = vmatpush.msra.mxu0 %v97
  %218 = vmatpush.msra.mxu0 %v95
  %219 = vmatpush.msra.mxu0 %v93
  %220 = vmatpush.msra.mxu0 %v91
  %221 = vmatpush.msra.mxu0 %v89
  %222 = vmatpush.msra.mxu0 %v87
  %223 = vmatpush.msra.mxu0 %v85
  %224 = vmatmul.f32.gmra.mxu0 %v30
  %v225 = vpop.f32.mrf.mxu0
  %v226 = vadd.f32 %v185, %v225
  %227 = vmatmul.f32.gmra.mxu0 %v33
  %v228 = vpop.f32.mrf.mxu0
  %v229 = vadd.f32 %v188, %v228
  %230 = vmatmul.f32.gmra.mxu0 %v36
  %v231 = vpop.f32.mrf.mxu0
  %v232 = vadd.f32 %v191, %v231
  %233 = vmatmul.f32.gmra.mxu0 %v39
  %v234 = vpop.f32.mrf.mxu0
  %v235 = vadd.f32 %v194, %v234
  %236 = vmatmul.f32.gmra.mxu0 %v42
  %v237 = vpop.f32.mrf.mxu0
  %v238 = vadd.f32 %v197, %v237
  %239 = vmatmul.f32.gmra.mxu0 %v45
  %v240 = vpop.f32.mrf.mxu0
  %v241 = vadd.f32 %v200, %v240
  %242 = vmatmul.f32.gmra.mxu0 %v48
  %v243 = vpop.f32.mrf.mxu0
  %v244 = vadd.f32 %v203, %v243
  %245 = vmatmul.f32.gmra.mxu0 %v51
  %v246 = vpop.f32.mrf.mxu0
  %v247 = vadd.f32 %v206, %v246
  %248 = vdwg.mxu0
  %249 = vmatpush.msra.mxu0 0.0
  %250 = vmatpush.msra.mxu0 0.0
  %251 = vmatpush.msra.mxu0 0.0
  %252 = vmatpush.msra.mxu0 0.0
  %253 = vmatpush.msra.mxu0 0.0
  %254 = vmatpush.msra.mxu0 0.0
  %255 = vmatpush.msra.mxu0 0.0
  %256 = vmatpush.msra.mxu0 0.0
  %257 = vmatpush.msra.mxu0 0.0
  %258 = vmatpush.msra.mxu0 0.0
  %259 = vmatpush.msra.mxu0 %v162
  %260 = vmatpush.msra.mxu0 %v125
  %261 = vmatpush.msra.mxu0 %v123
  %262 = vmatpush.msra.mxu0 %v121
  %263 = vmatpush.msra.mxu0 %v119
  %264 = vmatpush.msra.mxu0 %v117
  %265 = vmatmul.f32.gmra.mxu0 %v137
  %v266 = vpop.f32.mrf.mxu0
  %v267 = vadd.f32 %v226, %v266
  %268 = vmatmul.f32.gmra.mxu0 %v140
  %v269 = vpop.f32.mrf.mxu0
  %v270 = vadd.f32 %v229, %v269
  %271 = vmatmul.f32.gmra.mxu0 %v143
  %v272 = vpop.f32.mrf.mxu0
  %v273 = vadd.f32 %v232, %v272
  %274 = vmatmul.f32.gmra.mxu0 %v146
  %v275 = vpop.f32.mrf.mxu0
  %v276 = vadd.f32 %v235, %v275
  %277 = vmatmul.f32.gmra.mxu0 %v149
  %v278 = vpop.f32.mrf.mxu0
  %v279 = vadd.f32 %v238, %v278
  %280 = vmatmul.f32.gmra.mxu0 %v152
  %v281 = vpop.f32.mrf.mxu0
  %v282 = vadd.f32 %v241, %v281
  %283 = vmatmul.f32.gmra.mxu0 %v155
  %v284 = vpop.f32.mrf.mxu0
  %v285 = vadd.f32 %v244, %v284
  %286 = vmatmul.f32.gmra.mxu0 %v158
  %v287 = vpop.f32.mrf.mxu0
  %v288 = vadd.f32 %v247, %v287
  %289 = vdwg.mxu0
  %290 = vmatpush.msra.mxu0 %v84
  %291 = vmatpush.msra.mxu0 %v82
  %292 = vmatpush.msra.mxu0 %v80
  %293 = vmatpush.msra.mxu0 %v78
  %294 = vmatpush.msra.mxu0 %v76
  %295 = vmatpush.msra.mxu0 %v74
  %296 = vmatpush.msra.mxu0 %v72
  %297 = vmatpush.msra.mxu0 %v70
  %298 = vmatpush.msra.mxu0 %v68
  %299 = vmatpush.msra.mxu0 %v66
  %300 = vmatpush.msra.mxu0 %v64
  %301 = vmatpush.msra.mxu0 %v62
  %302 = vmatpush.msra.mxu0 %v60
  %303 = vmatpush.msra.mxu0 %v58
  %304 = vmatpush.msra.mxu0 %v56
  %305 = vmatpush.msra.mxu0 %v54
  %306 = vmatmul.f32.gmra.mxu0 %v29
  %v307 = vpop.f32.mrf.mxu0
  %v308 = vadd.f32 %v132, %v307
  %309 = vmatmul.f32.gmra.mxu0 %v32
  %v310 = vpop.f32.mrf.mxu0
  %v311 = vadd.f32 %v132, %v310
  %312 = vmatmul.f32.gmra.mxu0 %v35
  %v313 = vpop.f32.mrf.mxu0
  %v314 = vadd.f32 %v132, %v313
  %315 = vmatmul.f32.gmra.mxu0 %v38
  %v316 = vpop.f32.mrf.mxu0
  %v317 = vadd.f32 %v132, %v316
  %318 = vmatmul.f32.gmra.mxu0 %v41
  %v319 = vpop.f32.mrf.mxu0
  %v320 = vadd.f32 %v132, %v319
  %321 = vmatmul.f32.gmra.mxu0 %v44
  %v322 = vpop.f32.mrf.mxu0
  %v323 = vadd.f32 %v132, %v322
  %324 = vmatmul.f32.gmra.mxu0 %v47
  %v325 = vpop.f32.mrf.mxu0
  %v326 = vadd.f32 %v132, %v325
  %327 = vmatmul.f32.gmra.mxu0 %v50
  %v328 = vpop.f32.mrf.mxu0
  %v329 = vadd.f32 %v132, %v328
  %330 = vdwg.mxu0
  %331 = vmatpush.msra.mxu0 %v116
  %332 = vmatpush.msra.mxu0 %v114
  %333 = vmatpush.msra.mxu0 %v112
  %334 = vmatpush.msra.mxu0 %v110
  %335 = vmatpush.msra.mxu0 %v108
  %336 = vmatpush.msra.mxu0 %v106
  %337 = vmatpush.msra.mxu0 %v104
  %338 = vmatpush.msra.mxu0 %v102
  %339 = vmatpush.msra.mxu0 %v100
  %340 = vmatpush.msra.mxu0 %v98
  %341 = vmatpush.msra.mxu0 %v96
  %342 = vmatpush.msra.mxu0 %v94
  %343 = vmatpush.msra.mxu0 %v92
  %344 = vmatpush.msra.mxu0 %v90
  %345 = vmatpush.msra.mxu0 %v88
  %346 = vmatpush.msra.mxu0 %v86
  %347 = vmatmul.f32.gmra.mxu0 %v30
  %v348 = vpop.f32.mrf.mxu0
  %v349 = vadd.f32 %v308, %v348
  %350 = vmatmul.f32.gmra.mxu0 %v33
  %v351 = vpop.f32.mrf.mxu0
  %v352 = vadd.f32 %v311, %v351
  %353 = vmatmul.f32.gmra.mxu0 %v36
  %v354 = vpop.f32.mrf.mxu0
  %v355 = vadd.f32 %v314, %v354
  %356 = vmatmul.f32.gmra.mxu0 %v39
  %v357 = vpop.f32.mrf.mxu0
  %v358 = vadd.f32 %v317, %v357
  %359 = vmatmul.f32.gmra.mxu0 %v42
  %v360 = vpop.f32.mrf.mxu0
  %v361 = vadd.f32 %v320, %v360
  %362 = vmatmul.f32.gmra.mxu0 %v45
  %v363 = vpop.f32.mrf.mxu0
  %v364 = vadd.f32 %v323, %v363
  %365 = vmatmul.f32.gmra.mxu0 %v48
  %v366 = vpop.f32.mrf.mxu0
  %v367 = vadd.f32 %v326, %v366
  %368 = vmatmul.f32.gmra.mxu0 %v51
  %v369 = vpop.f32.mrf.mxu0
  %v370 = vadd.f32 %v329, %v369
  %371 = vdwg.mxu0
  %372 = vmatpush.msra.mxu0 0.0
  %373 = vmatpush.msra.mxu0 0.0
  %374 = vmatpush.msra.mxu0 0.0
  %375 = vmatpush.msra.mxu0 0.0
  %376 = vmatpush.msra.mxu0 0.0
  %377 = vmatpush.msra.mxu0 0.0
  %378 = vmatpush.msra.mxu0 0.0
  %379 = vmatpush.msra.mxu0 0.0
  %380 = vmatpush.msra.mxu0 0.0
  %381 = vmatpush.msra.mxu0 0.0
  %382 = vmatpush.msra.mxu0 %v165
  %383 = vmatpush.msra.mxu0 %v126
  %384 = vmatpush.msra.mxu0 %v124
  %385 = vmatpush.msra.mxu0 %v122
  %386 = vmatpush.msra.mxu0 %v120
  %387 = vmatpush.msra.mxu0 %v118
  %388 = vmatmul.f32.gmra.mxu0 %v137
  %v389 = vpop.f32.mrf.mxu0
  %v390 = vadd.f32 %v349, %v389
  %391 = vmatmul.f32.gmra.mxu0 %v140
  %v392 = vpop.f32.mrf.mxu0
  %v393 = vadd.f32 %v352, %v392
  %394 = vmatmul.f32.gmra.mxu0 %v143
  %v395 = vpop.f32.mrf.mxu0
  %v396 = vadd.f32 %v355, %v395
  %397 = vmatmul.f32.gmra.mxu0 %v146
  %v398 = vpop.f32.mrf.mxu0
  %v399 = vadd.f32 %v358, %v398
  %400 = vmatmul.f32.gmra.mxu0 %v149
  %v401 = vpop.f32.mrf.mxu0
  %v402 = vadd.f32 %v361, %v401
  %403 = vmatmul.f32.gmra.mxu0 %v152
  %v404 = vpop.f32.mrf.mxu0
  %v405 = vadd.f32 %v364, %v404
  %406 = vmatmul.f32.gmra.mxu0 %v155
  %v407 = vpop.f32.mrf.mxu0
  %v408 = vadd.f32 %v367, %v407
  %409 = vmatmul.f32.gmra.mxu0 %v158
  %v410 = vpop.f32.mrf.mxu0
  %v411 = vadd.f32 %v370, %v410
  %412 = vdwg.mxu0
  %v413 = vmax.f32 %v267, 0.0
  %v414 = vmax.f32 %v390, 0.0
  %v415 = vmax.f32 %v270, 0.0
  %v416 = vmax.f32 %v393, 0.0
  %v417 = vmax.f32 %v273, 0.0
  %v418 = vmax.f32 %v396, 0.0
  %v419 = vmax.f32 %v276, 0.0
  %v420 = vmax.f32 %v399, 0.0
  %v421 = vmax.f32 %v279, 0.0
  %v422 = vmax.f32 %v402, 0.0
  %v423 = vmax.f32 %v282, 0.0
  %v424 = vmax.f32 %v405, 0.0
  %v425 = vmax.f32 %v285, 0.0
  %v426 = vmax.f32 %v408, 0.0
  %v427 = vmax.f32 %v288, 0.0
  %v428 = vmax.f32 %v411, 0.0
  %v429 = vld [vmem:[%s3] sm:$0xff]
  %v430 = vld [vmem:[%s3 + $0x8] sm:$0xff]
  %v431 = vld [vmem:[%s3 + $0x10] sm:$0xff]
  %v432 = vld [vmem:[%s3 + $0x18] sm:$0xff]
  %v433 = vld [vmem:[%s3 + $0x20] sm:$0xff]
  %v434 = vld [vmem:[%s3 + $0x28] sm:$0xff]
  %v435 = vld [vmem:[%s3 + $0x30] sm:$0xff]
  %v436 = vld [vmem:[%s3 + $0x38] sm:$0xff]
  %v437 = vld [vmem:[%s3 + $0x40] sm:$0xff]
  %v438 = vld [vmem:[%s3 + $0x48] sm:$0xff]
  %v439 = vld [vmem:[%s3 + $0x50] sm:$0xff]
  %v440 = vld [vmem:[%s3 + $0x58] sm:$0xff]
  %v441 = vld [vmem:[%s3 + $0x60] sm:$0xff]
  %v442 = vld [vmem:[%s3 + $0x68] sm:$0xff]
  %v443 = vld [vmem:[%s3 + $0x70] sm:$0xff]
  %v444 = vld [vmem:[%s3 + $0x78] sm:$0xff]
  %v445 = vld [vmem:[%s3 + $0x80] sm:$0xff]
  %v446 = vld [vmem:[%s3 + $0x88] sm:$0xff]
  %v447 = vld [vmem:[%s3 + $0x90] sm:$0xff]
  %v448 = vld [vmem:[%s3 + $0x98] sm:$0xff]
  %v449 = vld [vmem:[%s3 + $0xa0] sm:$0xff]
  %v450 = vld [vmem:[%s3 + $0xa8] sm:$0xff]
  %v451 = vld [vmem:[%s3 + $0xb0] sm:$0xff]
  %v452 = vld [vmem:[%s3 + $0xb8] sm:$0xff]
  %v453 = vld [vmem:[%s3 + $0xc0] sm:$0xff]
  %v454 = vld [vmem:[%s3 + $0xc8] sm:$0xff]
  %v455 = vld [vmem:[%s3 + $0xd0] sm:$0xff]
  %v456 = vld [vmem:[%s3 + $0xd8] sm:$0xff]
  %v457 = vld [vmem:[%s3 + $0xe0] sm:$0xff]
  %v458 = vld [vmem:[%s3 + $0xe8] sm:$0xff]
  %v459 = vld [vmem:[%s3 + $0xf0] sm:$0xff]
  %v460 = vld [vmem:[%s3 + $0xf8] sm:$0xff]
  %v461 = vld [vmem:[%s3 + $0x100] sm:$0xff]
  %v462 = vld [vmem:[%s3 + $0x108] sm:$0xff]
  %v463 = vld [vmem:[%s3 + $0x110] sm:$0xff]
  %v464 = vld [vmem:[%s3 + $0x118] sm:$0xff]
  %v465 = vld [vmem:[%s3 + $0x120] sm:$0xff]
  %v466 = vld [vmem:[%s3 + $0x128] sm:$0xff]
  %v467 = vld [vmem:[%s3 + $0x130] sm:$0xff]
  %v468 = vld [vmem:[%s3 + $0x138] sm:$0xff]
  %v469 = vld [vmem:[%s3 + $0x140] sm:$0xff]
  %v470 = vld [vmem:[%s3 + $0x148] sm:$0xff]
  %v471 = vld [vmem:[%s3 + $0x150] sm:$0xff]
  %v472 = vld [vmem:[%s3 + $0x158] sm:$0xff]
  %v473 = vld [vmem:[%s3 + $0x160] sm:$0xff]
  %v474 = vld [vmem:[%s3 + $0x168] sm:$0xff]
  %v475 = vld [vmem:[%s3 + $0x170] sm:$0xff]
  %v476 = vld [vmem:[%s3 + $0x178] sm:$0xff]
  %v477 = vld [vmem:[%s3 + $0x180] sm:$0xff]
  %v478 = vld [vmem:[%s3 + $0x188] sm:$0xff]
  %v479 = vld [vmem:[%s3 + $0x190] sm:$0xff]
  %v480 = vld [vmem:[%s3 + $0x198] sm:$0xff]
  %v481 = vld [vmem:[%s3 + $0x1a0] sm:$0xff]
  %v482 = vld [vmem:[%s3 + $0x1a8] sm:$0xff]
  %v483 = vld [vmem:[%s3 + $0x1b0] sm:$0xff]
  %v484 = vld [vmem:[%s3 + $0x1b8] sm:$0xff]
  %v485 = vld [vmem:[%s3 + $0x1c0] sm:$0xff]
  %v486 = vld [vmem:[%s3 + $0x1c8] sm:$0xff]
  %v487 = vld [vmem:[%s3 + $0x1d0] sm:$0xff]
  %v488 = vld [vmem:[%s3 + $0x1d8] sm:$0xff]
  %v489 = vld [vmem:[%s3 + $0x1e0] sm:$0xff]
  %v490 = vld [vmem:[%s3 + $0x1e8] sm:$0xff]
  %v491 = vld [vmem:[%s3 + $0x1f0] sm:$0xff]
  %v492 = vld [vmem:[%s3 + $0x1f8] sm:$0xff]
  %v493 = vld [vmem:[%s3 + $0x200] sm:$0xff]
  %v494 = vld [vmem:[%s3 + $0x208] sm:$0xff]
  %v495 = vld [vmem:[%s3 + $0x210] sm:$0xff]
  %v496 = vld [vmem:[%s3 + $0x218] sm:$0xff]
  %v497 = vld [vmem:[%s3 + $0x220] sm:$0xff]
  %v498 = vld [vmem:[%s3 + $0x228] sm:$0xff]
  %v499 = vld [vmem:[%s3 + $0x230] sm:$0xff]
  %v500 = vld [vmem:[%s3 + $0x238] sm:$0xff]
  %v501 = vld [vmem:[%s3 + $0x240] sm:$0xff]
  %v502 = vld [vmem:[%s3 + $0x248] sm:$0xff]
  %v503 = vld [vmem:[%s3 + $0x250] sm:$0xff]
  %v504 = vld [vmem:[%s3 + $0x258] sm:$0xff]
  %v505 = vld [vmem:[%s3 + $0x260] sm:$0xff]
  %v506 = vld [vmem:[%s3 + $0x268] sm:$0xff]
  %v507 = vld [vmem:[%s3 + $0x270] sm:$0xff]
  %v508 = vld [vmem:[%s3 + $0x278] sm:$0xff]
  %v509 = vld [vmem:[%s3 + $0x280] sm:$0xff]
  %v510 = vld [vmem:[%s3 + $0x288] sm:$0xff]
  %v511 = vld [vmem:[%s3 + $0x290] sm:$0xff]
  %v512 = vld [vmem:[%s3 + $0x298] sm:$0xff]
  %v513 = vld [vmem:[%s3 + $0x2a0] sm:$0xff]
  %v514 = vld [vmem:[%s3 + $0x2a8] sm:$0xff]
  %v515 = vld [vmem:[%s3 + $0x2b0] sm:$0xff]
  %v516 = vld [vmem:[%s3 + $0x2b8] sm:$0xff]
  %v517 = vld [vmem:[%s3 + $0x2c0] sm:$0xff]
  %v518 = vld [vmem:[%s3 + $0x2c8] sm:$0xff]
  %v519 = vld [vmem:[%s3 + $0x2d0] sm:$0xff]
  %v520 = vld [vmem:[%s3 + $0x2d8] sm:$0xff]
  %v521 = vld [vmem:[%s3 + $0x2e0] sm:$0xff]
  %v522 = vld [vmem:[%s3 + $0x2e8] sm:$0xff]
  %v523 = vld [vmem:[%s3 + $0x2f0] sm:$0xff]
  %v524 = vld [vmem:[%s3 + $0x2f8] sm:$0xff]
  %v525 = vld [vmem:[%s3 + $0x300] sm:$0xff]
  %v526 = vld [vmem:[%s3 + $0x308] sm:$0xff]
  %v527 = vld [vmem:[%s3 + $0x310] sm:$0xff]
  %v528 = vld [vmem:[%s3 + $0x318] sm:$0xff]
  %v529 = vld [vmem:[%s3 + $0x320] sm:$0xff]
  %v530 = vld [vmem:[%s3 + $0x328] sm:$0xff]
  %v531 = vld [vmem:[%s3 + $0x330] sm:$0xff]
  %v532 = vld [vmem:[%s3 + $0x338] sm:$0xff]
  %v533 = vld [vmem:[%s3 + $0x340] sm:$0xff]
  %v534 = vld [vmem:[%s3 + $0x348] sm:$0xff]
  %v535 = vld [vmem:[%s3 + $0x350] sm:$0xff]
  %v536 = vld [vmem:[%s3 + $0x358] sm:$0xff]
  %v537 = vld [vmem:[%s3 + $0x360] sm:$0xff]
  %v538 = vld [vmem:[%s3 + $0x368] sm:$0xff]
  %v539 = vld [vmem:[%s3 + $0x370] sm:$0xff]
  %v540 = vld [vmem:[%s3 + $0x378] sm:$0xff]
  %v541 = vld [vmem:[%s3 + $0x380] sm:$0xff]
  %v542 = vld [vmem:[%s3 + $0x388] sm:$0xff]
  %v543 = vld [vmem:[%s3 + $0x390] sm:$0xff]
  %v544 = vld [vmem:[%s3 + $0x398] sm:$0xff]
  %v545 = vld [vmem:[%s3 + $0x3a0] sm:$0xff]
  %v546 = vld [vmem:[%s3 + $0x3a8] sm:$0xff]
  %v547 = vld [vmem:[%s3 + $0x3b0] sm:$0xff]
  %v548 = vld [vmem:[%s3 + $0x3b8] sm:$0xff]
  %v549 = vld [vmem:[%s3 + $0x3c0] sm:$0xff]
  %v550 = vld [vmem:[%s3 + $0x3c8] sm:$0xff]
  %v551 = vld [vmem:[%s3 + $0x3d0] sm:$0xff]
  %v552 = vld [vmem:[%s3 + $0x3d8] sm:$0xff]
  %v553 = vld [vmem:[%s3 + $0x3e0] sm:$0xff]
  %v554 = vld [vmem:[%s3 + $0x3e8] sm:$0xff]
  %v555 = vld [vmem:[%s3 + $0x3f0] sm:$0xff]
  %v556 = vld [vmem:[%s3 + $0x3f8] sm:$0xff]
  %v557 = vld [vmem:[%s5] sm:$0xf]
  %v559 = vperm.slane %v557, 0
  %v560 = vperm.slane %v557, 1
  %v561 = vperm.slane %v557, 2
  %v562 = vperm.slane %v557, 3
  %567 = vmatpush.msra.mxu0 %v489
  %568 = vmatpush.msra.mxu0 %v485
  %569 = vmatpush.msra.mxu0 %v481
  %570 = vmatpush.msra.mxu0 %v477
  %571 = vmatpush.msra.mxu0 %v473
  %572 = vmatpush.msra.mxu0 %v469
  %573 = vmatpush.msra.mxu0 %v465
  %574 = vmatpush.msra.mxu0 %v461
  %575 = vmatpush.msra.mxu0 %v457
  %576 = vmatpush.msra.mxu0 %v453
  %577 = vmatpush.msra.mxu0 %v449
  %578 = vmatpush.msra.mxu0 %v445
  %579 = vmatpush.msra.mxu0 %v441
  %580 = vmatpush.msra.mxu0 %v437
  %581 = vmatpush.msra.mxu0 %v433
  %582 = vmatpush.msra.mxu0 %v429
  %583 = vmatmul.f32.gmra.mxu0 %v413
  %v584 = vpop.f32.mrf.mxu0
  %v585 = vadd.f32 %v559, %v584
  %586 = vmatmul.f32.gmra.mxu0 %v415
  %v587 = vpop.f32.mrf.mxu0
  %v588 = vadd.f32 %v559, %v587
  %589 = vmatmul.f32.gmra.mxu0 %v417
  %v590 = vpop.f32.mrf.mxu0
  %v591 = vadd.f32 %v559, %v590
  %592 = vmatmul.f32.gmra.mxu0 %v419
  %v593 = vpop.f32.mrf.mxu0
  %v594 = vadd.f32 %v559, %v593
  %595 = vmatmul.f32.gmra.mxu0 %v421
  %v596 = vpop.f32.mrf.mxu0
  %v597 = vadd.f32 %v559, %v596
  %598 = vmatmul.f32.gmra.mxu0 %v423
  %v599 = vpop.f32.mrf.mxu0
  %v600 = vadd.f32 %v559, %v599
  %601 = vmatmul.f32.gmra.mxu0 %v425
  %v602 = vpop.f32.mrf.mxu0
  %v603 = vadd.f32 %v559, %v602
  %604 = vmatmul.f32.gmra.mxu0 %v427
  %v605 = vpop.f32.mrf.mxu0
  %v606 = vadd.f32 %v559, %v605
  %607 = vdwg.mxu0
  %608 = vmatpush.msra.mxu0 %v553
  %609 = vmatpush.msra.mxu0 %v549
  %610 = vmatpush.msra.mxu0 %v545
  %611 = vmatpush.msra.mxu0 %v541
  %612 = vmatpush.msra.mxu0 %v537
  %613 = vmatpush.msra.mxu0 %v533
  %614 = vmatpush.msra.mxu0 %v529
  %615 = vmatpush.msra.mxu0 %v525
  %616 = vmatpush.msra.mxu0 %v521
  %617 = vmatpush.msra.mxu0 %v517
  %618 = vmatpush.msra.mxu0 %v513
  %619 = vmatpush.msra.mxu0 %v509
  %620 = vmatpush.msra.mxu0 %v505
  %621 = vmatpush.msra.mxu0 %v501
  %622 = vmatpush.msra.mxu0 %v497
  %623 = vmatpush.msra.mxu0 %v493
  %624 = vmatmul.f32.gmra.mxu0 %v414
  %v625 = vpop.f32.mrf.mxu0
  %v626 = vadd.f32 %v585, %v625
  %627 = vmatmul.f32.gmra.mxu0 %v416
  %v628 = vpop.f32.mrf.mxu0
  %v629 = vadd.f32 %v588, %v628
  %630 = vmatmul.f32.gmra.mxu0 %v418
  %v631 = vpop.f32.mrf.mxu0
  %v632 = vadd.f32 %v591, %v631
  %633 = vmatmul.f32.gmra.mxu0 %v420
  %v634 = vpop.f32.mrf.mxu0
  %v635 = vadd.f32 %v594, %v634
  %636 = vmatmul.f32.gmra.mxu0 %v422
  %v637 = vpop.f32.mrf.mxu0
  %v638 = vadd.f32 %v597, %v637
  %639 = vmatmul.f32.gmra.mxu0 %v424
  %v640 = vpop.f32.mrf.mxu0
  %v641 = vadd.f32 %v600, %v640
  %642 = vmatmul.f32.gmra.mxu0 %v426
  %v643 = vpop.f32.mrf.mxu0
  %v644 = vadd.f32 %v603, %v643
  %645 = vmatmul.f32.gmra.mxu0 %v428
  %v646 = vpop.f32.mrf.mxu0
  %v647 = vadd.f32 %v606, %v646
  %648 = vdwg.mxu0
  %649 = vmatpush.msra.mxu0 %v490
  %650 = vmatpush.msra.mxu0 %v486
  %651 = vmatpush.msra.mxu0 %v482
  %652 = vmatpush.msra.mxu0 %v478
  %653 = vmatpush.msra.mxu0 %v474
  %654 = vmatpush.msra.mxu0 %v470
  %655 = vmatpush.msra.mxu0 %v466
  %656 = vmatpush.msra.mxu0 %v462
  %657 = vmatpush.msra.mxu0 %v458
  %658 = vmatpush.msra.mxu0 %v454
  %659 = vmatpush.msra.mxu0 %v450
  %660 = vmatpush.msra.mxu0 %v446
  %661 = vmatpush.msra.mxu0 %v442
  %662 = vmatpush.msra.mxu0 %v438
  %663 = vmatpush.msra.mxu0 %v434
  %664 = vmatpush.msra.mxu0 %v430
  %665 = vmatmul.f32.gmra.mxu0 %v413
  %v666 = vpop.f32.mrf.mxu0
  %v667 = vadd.f32 %v560, %v666
  %668 = vmatmul.f32.gmra.mxu0 %v415
  %v669 = vpop.f32.mrf.mxu0
  %v670 = vadd.f32 %v560, %v669
  %671 = vmatmul.f32.gmra.mxu0 %v417
  %v672 = vpop.f32.mrf.mxu0
  %v673 = vadd.f32 %v560, %v672
  %674 = vmatmul.f32.gmra.mxu0 %v419
  %v675 = vpop.f32.mrf.mxu0
  %v676 = vadd.f32 %v560, %v675
  %677 = vmatmul.f32.gmra.mxu0 %v421
  %v678 = vpop.f32.mrf.mxu0
  %v679 = vadd.f32 %v560, %v678
  %680 = vmatmul.f32.gmra.mxu0 %v423
  %v681 = vpop.f32.mrf.mxu0
  %v682 = vadd.f32 %v560, %v681
  %683 = vmatmul.f32.gmra.mxu0 %v425
  %v684 = vpop.f32.mrf.mxu0
  %v685 = vadd.f32 %v560, %v684
  %686 = vmatmul.f32.gmra.mxu0 %v427
  %v687 = vpop.f32.mrf.mxu0
  %v688 = vadd.f32 %v560, %v687
  %689 = vdwg.mxu0
  %690 = vmatpush.msra.mxu0 %v554
  %691 = vmatpush.msra.mxu0 %v550
  %692 = vmatpush.msra.mxu0 %v546
  %693 = vmatpush.msra.mxu0 %v542
  %694 = vmatpush.msra.mxu0 %v538
  %695 = vmatpush.msra.mxu0 %v534
  %696 = vmatpush.msra.mxu0 %v530
  %697 = vmatpush.msra.mxu0 %v526
  %698 = vmatpush.msra.mxu0 %v522
  %699 = vmatpush.msra.mxu0 %v518
  %700 = vmatpush.msra.mxu0 %v514
  %701 = vmatpush.msra.mxu0 %v510
  %702 = vmatpush.msra.mxu0 %v506
  %703 = vmatpush.msra.mxu0 %v502
  %704 = vmatpush.msra.mxu0 %v498
  %705 = vmatpush.msra.mxu0 %v494
  %706 = vmatmul.f32.gmra.mxu0 %v414
  %v707 = vpop.f32.mrf.mxu0
  %v708 = vadd.f32 %v667, %v707
  %709 = vmatmul.f32.gmra.mxu0 %v416
  %v710 = vpop.f32.mrf.mxu0
  %v711 = vadd.f32 %v670, %v710
  %712 = vmatmul.f32.gmra.mxu0 %v418
  %v713 = vpop.f32.mrf.mxu0
  %v714 = vadd.f32 %v673, %v713
  %715 = vmatmul.f32.gmra.mxu0 %v420
  %v716 = vpop.f32.mrf.mxu0
  %v717 = vadd.f32 %v676, %v716
  %718 = vmatmul.f32.gmra.mxu0 %v422
  %v719 = vpop.f32.mrf.mxu0
  %v720 = vadd.f32 %v679, %v719
  %721 = vmatmul.f32.gmra.mxu0 %v424
  %v722 = vpop.f32.mrf.mxu0
  %v723 = vadd.f32 %v682, %v722
  %724 = vmatmul.f32.gmra.mxu0 %v426
  %v725 = vpop.f32.mrf.mxu0
  %v726 = vadd.f32 %v685, %v725
  %727 = vmatmul.f32.gmra.mxu0 %v428
  %v728 = vpop.f32.mrf.mxu0
  %v729 = vadd.f32 %v688, %v728
  %730 = vdwg.mxu0
  %731 = vmatpush.msra.mxu0 %v491
  %732 = vmatpush.msra.mxu0 %v487
  %733 = vmatpush.msra.mxu0 %v483
  %734 = vmatpush.msra.mxu0 %v479
  %735 = vmatpush.msra.mxu0 %v475
  %736 = vmatpush.msra.mxu0 %v471
  %737 = vmatpush.msra.mxu0 %v467
  %738 = vmatpush.msra.mxu0 %v463
  %739 = vmatpush.msra.mxu0 %v459
  %740 = vmatpush.msra.mxu0 %v455
  %741 = vmatpush.msra.mxu0 %v451
  %742 = vmatpush.msra.mxu0 %v447
  %743 = vmatpush.msra.mxu0 %v443
  %744 = vmatpush.msra.mxu0 %v439
  %745 = vmatpush.msra.mxu0 %v435
  %746 = vmatpush.msra.mxu0 %v431
  %747 = vmatmul.f32.gmra.mxu0 %v413
  %v748 = vpop.f32.mrf.mxu0
  %v749 = vadd.f32 %v561, %v748
  %750 = vmatmul.f32.gmra.mxu0 %v415
  %v751 = vpop.f32.mrf.mxu0
  %v752 = vadd.f32 %v561, %v751
  %753 = vmatmul.f32.gmra.mxu0 %v417
  %v754 = vpop.f32.mrf.mxu0
  %v755 = vadd.f32 %v561, %v754
  %756 = vmatmul.f32.gmra.mxu0 %v419
  %v757 = vpop.f32.mrf.mxu0
  %v758 = vadd.f32 %v561, %v757
  %759 = vmatmul.f32.gmra.mxu0 %v421
  %v760 = vpop.f32.mrf.mxu0
  %v761 = vadd.f32 %v561, %v760
  %762 = vmatmul.f32.gmra.mxu0 %v423
  %v763 = vpop.f32.mrf.mxu0
  %v764 = vadd.f32 %v561, %v763
  %765 = vmatmul.f32.gmra.mxu0 %v425
  %v766 = vpop.f32.mrf.mxu0
  %v767 = vadd.f32 %v561, %v766
  %768 = vmatmul.f32.gmra.mxu0 %v427
  %v769 = vpop.f32.mrf.mxu0
  %v770 = vadd.f32 %v561, %v769
  %771 = vdwg.mxu0
  %772 = vmatpush.msra.mxu0 %v555
  %773 = vmatpush.msra.mxu0 %v551
  %774 = vmatpush.msra.mxu0 %v547
  %775 = vmatpush.msra.mxu0 %v543
  %776 = vmatpush.msra.mxu0 %v539
  %777 = vmatpush.msra.mxu0 %v535
  %778 = vmatpush.msra.mxu0 %v531
  %779 = vmatpush.msra.mxu0 %v527
  %780 = vmatpush.msra.mxu0 %v523
  %781 = vmatpush.msra.mxu0 %v519
  %782 = vmatpush.msra.mxu0 %v515
  %783 = vmatpush.msra.mxu0 %v511
  %784 = vmatpush.msra.mxu0 %v507
  %785 = vmatpush.msra.mxu0 %v503
  %786 = vmatpush.msra.mxu0 %v499
  %787 = vmatpush.msra.mxu0 %v495
  %788 = vmatmul.f32.gmra.mxu0 %v414
  %v789 = vpop.f32.mrf.mxu0
  %v790 = vadd.f32 %v749, %v789
  %791 = vmatmul.f32.gmra.mxu0 %v416
  %v792 = vpop.f32.mrf.mxu0
  %v793 = vadd.f32 %v752, %v792
  %794 = vmatmul.f32.gmra.mxu0 %v418
  %v795 = vpop.f32.mrf.mxu0
  %v796 = vadd.f32 %v755, %v795
  %797 = vmatmul.f32.gmra.mxu0 %v420
  %v798 = vpop.f32.mrf.mxu0
  %v799 = vadd.f32 %v758, %v798
  %800 = vmatmul.f32.gmra.mxu0 %v422
  %v801 = vpop.f32.mrf.mxu0
  %v802 = vadd.f32 %v761, %v801
  %803 = vmatmul.f32.gmra.mxu0 %v424
  %v804 = vpop.f32.mrf.mxu0
  %v805 = vadd.f32 %v764, %v804
  %806 = vmatmul.f32.gmra.mxu0 %v426
  %v807 = vpop.f32.mrf.mxu0
  %v808 = vadd.f32 %v767, %v807
  %809 = vmatmul.f32.gmra.mxu0 %v428
  %v810 = vpop.f32.mrf.mxu0
  %v811 = vadd.f32 %v770, %v810
  %812 = vdwg.mxu0
  %813 = vmatpush.msra.mxu0 %v492
  %814 = vmatpush.msra.mxu0 %v488
  %815 = vmatpush.msra.mxu0 %v484
  %816 = vmatpush.msra.mxu0 %v480
  %817 = vmatpush.msra.mxu0 %v476
  %818 = vmatpush.msra.mxu0 %v472
  %819 = vmatpush.msra.mxu0 %v468
  %820 = vmatpush.msra.mxu0 %v464
  %821 = vmatpush.msra.mxu0 %v460
  %822 = vmatpush.msra.mxu0 %v456
  %823 = vmatpush.msra.mxu0 %v452
  %824 = vmatpush.msra.mxu0 %v448
  %825 = vmatpush.msra.mxu0 %v444
  %826 = vmatpush.msra.mxu0 %v440
  %827 = vmatpush.msra.mxu0 %v436
  %828 = vmatpush.msra.mxu0 %v432
  %829 = vmatmul.f32.gmra.mxu0 %v413
  %v830 = vpop.f32.mrf.mxu0
  %v831 = vadd.f32 %v562, %v830
  %832 = vmatmul.f32.gmra.mxu0 %v415
  %v833 = vpop.f32.mrf.mxu0
  %v834 = vadd.f32 %v562, %v833
  %835 = vmatmul.f32.gmra.mxu0 %v417
  %v836 = vpop.f32.mrf.mxu0
  %v837 = vadd.f32 %v562, %v836
  %838 = vmatmul.f32.gmra.mxu0 %v419
  %v839 = vpop.f32.mrf.mxu0
  %v840 = vadd.f32 %v562, %v839
  %841 = vmatmul.f32.gmra.mxu0 %v421
  %v842 = vpop.f32.mrf.mxu0
  %v843 = vadd.f32 %v562, %v842
  %844 = vmatmul.f32.gmra.mxu0 %v423
  %v845 = vpop.f32.mrf.mxu0
  %v846 = vadd.f32 %v562, %v845
  %847 = vmatmul.f32.gmra.mxu0 %v425
  %v848 = vpop.f32.mrf.mxu0
  %v849 = vadd.f32 %v562, %v848
  %850 = vmatmul.f32.gmra.mxu0 %v427
  %v851 = vpop.f32.mrf.mxu0
  %v852 = vadd.f32 %v562, %v851
  %853 = vdwg.mxu0
  %854 = vmatpush.msra.mxu0 %v556
  %855 = vmatpush.msra.mxu0 %v552
  %856 = vmatpush.msra.mxu0 %v548
  %857 = vmatpush.msra.mxu0 %v544
  %858 = vmatpush.msra.mxu0 %v540
  %859 = vmatpush.msra.mxu0 %v536
  %860 = vmatpush.msra.mxu0 %v532
  %861 = vmatpush.msra.mxu0 %v528
  %862 = vmatpush.msra.mxu0 %v524
  %863 = vmatpush.msra.mxu0 %v520
  %864 = vmatpush.msra.mxu0 %v516
  %865 = vmatpush.msra.mxu0 %v512
  %866 = vmatpush.msra.mxu0 %v508
  %867 = vmatpush.msra.mxu0 %v504
  %868 = vmatpush.msra.mxu0 %v500
  %869 = vmatpush.msra.mxu0 %v496
  %870 = vmatmul.f32.gmra.mxu0 %v414
  %v871 = vpop.f32.mrf.mxu0
  %v872 = vadd.f32 %v831, %v871
  %873 = vmatmul.f32.gmra.mxu0 %v416
  %v874 = vpop.f32.mrf.mxu0
  %v875 = vadd.f32 %v834, %v874
  %876 = vmatmul.f32.gmra.mxu0 %v418
  %v877 = vpop.f32.mrf.mxu0
  %v878 = vadd.f32 %v837, %v877
  %879 = vmatmul.f32.gmra.mxu0 %v420
  %v880 = vpop.f32.mrf.mxu0
  %v881 = vadd.f32 %v840, %v880
  %882 = vmatmul.f32.gmra.mxu0 %v422
  %v883 = vpop.f32.mrf.mxu0
  %v884 = vadd.f32 %v843, %v883
  %885 = vmatmul.f32.gmra.mxu0 %v424
  %v886 = vpop.f32.mrf.mxu0
  %v887 = vadd.f32 %v846, %v886
  %888 = vmatmul.f32.gmra.mxu0 %v426
  %v889 = vpop.f32.mrf.mxu0
  %v890 = vadd.f32 %v849, %v889
  %891 = vmatmul.f32.gmra.mxu0 %v428
  %v892 = vpop.f32.mrf.mxu0
  %v893 = vadd.f32 %v852, %v892
  %894 = vdwg.mxu0
  %v895 = vld [vmem:[%s4] sm:$0xff]
  %v896 = vld [vmem:[%s4 + $0x8] sm:$0xff]
  %v897 = vld [vmem:[%s4 + $0x10] sm:$0xff]
  %v898 = vld [vmem:[%s4 + $0x18] sm:$0xff]
  %v899 = vld [vmem:[%s4 + $0x20] sm:$0xff]
  %v900 = vld [vmem:[%s4 + $0x28] sm:$0xff]
  %v901 = vld [vmem:[%s4 + $0x30] sm:$0xff]
  %v902 = vld [vmem:[%s4 + $0x38] sm:$0xff]
  %v903 = vld [vmem:[%s4 + $0x40] sm:$0xff]
  %v904 = vld [vmem:[%s4 + $0x48] sm:$0xff]
  %v905 = vld [vmem:[%s4 + $0x50] sm:$0xff]
  %v906 = vld [vmem:[%s4 + $0x58] sm:$0xff]
  %v907 = vld [vmem:[%s4 + $0x60] sm:$0xff]
  %v908 = vld [vmem:[%s4 + $0x68] sm:$0xff]
  %v909 = vld [vmem:[%s4 + $0x70] sm:$0xff]
  %v910 = vld [vmem:[%s4 + $0x78] sm:$0xff]
  %v911 = vld [vmem:[%s4 + $0x80] sm:$0xff]
  %v912 = vld [vmem:[%s4 + $0x88] sm:$0xff]
  %v913 = vld [vmem:[%s4 + $0x90] sm:$0xff]
  %v914 = vld [vmem:[%s4 + $0x98] sm:$0xff]
  %v915 = vld [vmem:[%s4 + $0xa0] sm:$0xff]
  %v916 = vld [vmem:[%s4 + $0xa8] sm:$0xff]
  %v917 = vld [vmem:[%s4 + $0xb0] sm:$0xff]
  %v918 = vld [vmem:[%s4 + $0xb8] sm:$0xff]
  %v919 = vld [vmem:[%s4 + $0xc0] sm:$0xff]
  %v920 = vld [vmem:[%s4 + $0xc8] sm:$0xff]
  %v921 = vld [vmem:[%s4 + $0xd0] sm:$0xff]
  %v922 = vld [vmem:[%s4 + $0xd8] sm:$0xff]
  %v923 = vld [vmem:[%s4 + $0xe0] sm:$0xff]
  %v924 = vld [vmem:[%s4 + $0xe8] sm:$0xff]
  %v925 = vld [vmem:[%s4 + $0xf0] sm:$0xff]
  %v926 = vld [vmem:[%s4 + $0xf8] sm:$0xff]
  %v927 = vld [vmem:[%s4 + $0x100] sm:$0xff]
  %v928 = vld [vmem:[%s4 + $0x108] sm:$0xff]
  %v929 = vld [vmem:[%s4 + $0x110] sm:$0xff]
  %v930 = vld [vmem:[%s4 + $0x118] sm:$0xff]
  %v931 = vld [vmem:[%s4 + $0x120] sm:$0xff]
  %v932 = vld [vmem:[%s4 + $0x128] sm:$0xff]
  %v933 = vld [vmem:[%s4 + $0x130] sm:$0xff]
  %v934 = vld [vmem:[%s4 + $0x138] sm:$0xff]
  %v935 = vld [vmem:[%s4 + $0x140] sm:$0xff]
  %v936 = vld [vmem:[%s4 + $0x148] sm:$0xff]
  %v937 = vld [vmem:[%s4 + $0x150] sm:$0xff]
  %v938 = vld [vmem:[%s4 + $0x158] sm:$0xff]
  %v939 = vld [vmem:[%s4 + $0x160] sm:$0xff]
  %v940 = vld [vmem:[%s4 + $0x168] sm:$0xff]
  %v941 = vld [vmem:[%s4 + $0x170] sm:$0xff]
  %v942 = vld [vmem:[%s4 + $0x178] sm:$0xff]
  %v943 = vld [vmem:[%s4 + $0x180] sm:$0xff]
  %v944 = vld [vmem:[%s4 + $0x188] sm:$0xff]
  %v945 = vld [vmem:[%s4 + $0x190] sm:$0xff]
  %v946 = vld [vmem:[%s4 + $0x198] sm:$0xff]
  %v947 = vld [vmem:[%s4 + $0x1a0] sm:$0xff]
  %v948 = vld [vmem:[%s4 + $0x1a8] sm:$0xff]
  %v949 = vld [vmem:[%s4 + $0x1b0] sm:$0xff]
  %v950 = vld [vmem:[%s4 + $0x1b8] sm:$0xff]
  %v951 = vld [vmem:[%s4 + $0x1c0] sm:$0xff]
  %v952 = vld [vmem:[%s4 + $0x1c8] sm:$0xff]
  %v953 = vld [vmem:[%s4 + $0x1d0] sm:$0xff]
  %v954 = vld [vmem:[%s4 + $0x1d8] sm:$0xff]
  %v955 = vld [vmem:[%s4 + $0x1e0] sm:$0xff]
  %v956 = vld [vmem:[%s4 + $0x1e8] sm:$0xff]
  %v957 = vld [vmem:[%s4 + $0x1f0] sm:$0xff]
  %v958 = vld [vmem:[%s4 + $0x1f8] sm:$0xff]
  %959 = vmatpush.msra.mxu0 %v955
  %960 = vmatpush.msra.mxu0 %v951
  %961 = vmatpush.msra.mxu0 %v947
  %962 = vmatpush.msra.mxu0 %v943
  %963 = vmatpush.msra.mxu0 %v939
  %964 = vmatpush.msra.mxu0 %v935
  %965 = vmatpush.msra.mxu0 %v931
  %966 = vmatpush.msra.mxu0 %v927
  %967 = vmatpush.msra.mxu0 %v923
  %968 = vmatpush.msra.mxu0 %v919
  %969 = vmatpush.msra.mxu0 %v915
  %970 = vmatpush.msra.mxu0 %v911
  %971 = vmatpush.msra.mxu0 %v907
  %972 = vmatpush.msra.mxu0 %v903
  %973 = vmatpush.msra.mxu0 %v899
  %974 = vmatpush.msra.mxu0 %v895
  %975 = vmatmul.f32.gmra.mxu0 0.0
  %v976 = vpop.f32.mrf.mxu0
  %v977 = vadd.f32 0.0, %v976
  %978 = vdwg.mxu0
  %979 = vmatpush.msra.mxu0 %v956
  %980 = vmatpush.msra.mxu0 %v952
  %981 = vmatpush.msra.mxu0 %v948
  %982 = vmatpush.msra.mxu0 %v944
  %983 = vmatpush.msra.mxu0 %v940
  %984 = vmatpush.msra.mxu0 %v936
  %985 = vmatpush.msra.mxu0 %v932
  %986 = vmatpush.msra.mxu0 %v928
  %987 = vmatpush.msra.mxu0 %v924
  %988 = vmatpush.msra.mxu0 %v920
  %989 = vmatpush.msra.mxu0 %v916
  %990 = vmatpush.msra.mxu0 %v912
  %991 = vmatpush.msra.mxu0 %v908
  %992 = vmatpush.msra.mxu0 %v904
  %993 = vmatpush.msra.mxu0 %v900
  %994 = vmatpush.msra.mxu0 %v896
  %995 = vmatmul.f32.gmra.mxu0 0.0
  %v996 = vpop.f32.mrf.mxu0
  %v997 = vadd.f32 0.0, %v996
  %998 = vdwg.mxu0
  %999 = vmatpush.msra.mxu0 %v957
  %1000 = vmatpush.msra.mxu0 %v953
  %1001 = vmatpush.msra.mxu0 %v949
  %1002 = vmatpush.msra.mxu0 %v945
  %1003 = vmatpush.msra.mxu0 %v941
  %1004 = vmatpush.msra.mxu0 %v937
  %1005 = vmatpush.msra.mxu0 %v933
  %1006 = vmatpush.msra.mxu0 %v929
  %1007 = vmatpush.msra.mxu0 %v925
  %1008 = vmatpush.msra.mxu0 %v921
  %1009 = vmatpush.msra.mxu0 %v917
  %1010 = vmatpush.msra.mxu0 %v913
  %1011 = vmatpush.msra.mxu0 %v909
  %1012 = vmatpush.msra.mxu0 %v905
  %1013 = vmatpush.msra.mxu0 %v901
  %1014 = vmatpush.msra.mxu0 %v897
  %1015 = vmatmul.f32.gmra.mxu0 0.0
  %v1016 = vpop.f32.mrf.mxu0
  %v1017 = vadd.f32 0.0, %v1016
  %1018 = vdwg.mxu0
  %1019 = vmatpush.msra.mxu0 %v958
  %1020 = vmatpush.msra.mxu0 %v954
  %1021 = vmatpush.msra.mxu0 %v950
  %1022 = vmatpush.msra.mxu0 %v946
  %1023 = vmatpush.msra.mxu0 %v942
  %1024 = vmatpush.msra.mxu0 %v938
  %1025 = vmatpush.msra.mxu0 %v934
  %1026 = vmatpush.msra.mxu0 %v930
  %1027 = vmatpush.msra.mxu0 %v926
  %1028 = vmatpush.msra.mxu0 %v922
  %1029 = vmatpush.msra.mxu0 %v918
  %1030 = vmatpush.msra.mxu0 %v914
  %1031 = vmatpush.msra.mxu0 %v910
  %1032 = vmatpush.msra.mxu0 %v906
  %1033 = vmatpush.msra.mxu0 %v902
  %1034 = vmatpush.msra.mxu0 %v898
  %1035 = vmatmul.f32.gmra.mxu0 0.0
  %v1036 = vpop.f32.mrf.mxu0
  %v1037 = vadd.f32 0.0, %v1036
  %1038 = vdwg.mxu0
  %v1039 = vadd.f32 %v626, %v977
  %v1040 = vadd.f32 %v708, %v997
  %v1041 = vadd.f32 %v790, %v1017
  %v1042 = vadd.f32 %v872, %v1037
  %v1043 = vxor.u32 %v1039, 2147483648
  %v1044 = vxor.u32 %v1040, 2147483648
  %v1045 = vxor.u32 %v1042, 2147483648
  %v1046 = vmul.f32 %v1043, 1.442695
  %v1047 = vpow.pop %v1046
  %v1048 = vmul.f32 %v1044, 1.442695
  %v1049 = vpow.pop %v1048
  %v1050 = vmul.f32 %v1045, 1.442695
  %v1051 = vpow.pop %v1050
  %v1052 = vadd.f32 %v1047, 1.0
  %v1053 = vadd.f32 %v1049, 1.0
  %v1054 = vadd.f32 %v1051, 1.0
  %v1055 = vrcp.pop %v1052
  %v1056 = vmul.f32 %v1052, %v1055
  %v1057 = vsub.f32 1.0, %v1056
  %v1058 = vmul.f32 %v1055, %v1057
  %v1059 = vadd.f32 %v1055, %v1058
  %vm1060 = vweird.f32 %v1052
  %vm1061 = vweird.f32 %v1055
  %vm1062 = vmor %vm1060, %vm1061
  %v1063 = vsel %vm1062, %v1055, %v1059
  %v1064 = vand.u32 2147483647, %v1052
  %vm1065 = vcmp.eq.f32.partialorder %v1064, 8.507059e+37
  %v1066 = vand.u32 %v1052, 2147483648
  %v1067 = vor.u32 1.1754944e-38, %v1066
  %v1068 = vsel %vm1065, %v1067, %v1063
  %v1069 = vmul.f32 1.0, %v1068
  %v1070 = vrcp.pop %v1053
  %v1071 = vmul.f32 %v1053, %v1070
  %v1072 = vsub.f32 1.0, %v1071
  %v1073 = vmul.f32 %v1070, %v1072
  %v1074 = vadd.f32 %v1070, %v1073
  %vm1075 = vweird.f32 %v1053
  %vm1076 = vweird.f32 %v1070
  %vm1077 = vmor %vm1075, %vm1076
  %v1078 = vsel %vm1077, %v1070, %v1074
  %v1079 = vand.u32 2147483647, %v1053
  %vm1080 = vcmp.eq.f32.partialorder %v1079, 8.507059e+37
  %v1081 = vand.u32 %v1053, 2147483648
  %v1082 = vor.u32 1.1754944e-38, %v1081
  %v1083 = vsel %vm1080, %v1082, %v1078
  %v1084 = vmul.f32 1.0, %v1083
  %v1085 = vrcp.pop %v1054
  %v1086 = vmul.f32 %v1054, %v1085
  %v1087 = vsub.f32 1.0, %v1086
  %v1088 = vmul.f32 %v1085, %v1087
  %v1089 = vadd.f32 %v1085, %v1088
  %vm1090 = vweird.f32 %v1054
  %vm1091 = vweird.f32 %v1085
  %vm1092 = vmor %vm1090, %vm1091
  %v1093 = vsel %vm1092, %v1085, %v1089
  %v1094 = vand.u32 2147483647, %v1054
  %vm1095 = vcmp.eq.f32.partialorder %v1094, 8.507059e+37
  %v1096 = vand.u32 %v1054, 2147483648
  %v1097 = vor.u32 1.1754944e-38, %v1096
  %v1098 = vsel %vm1095, %v1097, %v1093
  %v1099 = vmul.f32 1.0, %v1098
  %v1100 = vtanh.pop %v1041
  %v1101 = vmul.f32 %v1084, 0.0
  %v1102 = vmul.f32 %v1069, %v1100
  %v1103 = vadd.f32 %v1101, %v1102
  %v1104 = vtanh.pop %v1103
  %v1105 = vmul.f32 %v1099, %v1104
  %1106 = vmatpush.msra.mxu0 %v955
  %1107 = vmatpush.msra.mxu0 %v951
  %1108 = vmatpush.msra.mxu0 %v947
  %1109 = vmatpush.msra.mxu0 %v943
  %1110 = vmatpush.msra.mxu0 %v939
  %1111 = vmatpush.msra.mxu0 %v935
  %1112 = vmatpush.msra.mxu0 %v931
  %1113 = vmatpush.msra.mxu0 %v927
  %1114 = vmatpush.msra.mxu0 %v923
  %1115 = vmatpush.msra.mxu0 %v919
  %1116 = vmatpush.msra.mxu0 %v915
  %1117 = vmatpush.msra.mxu0 %v911
  %1118 = vmatpush.msra.mxu0 %v907
  %1119 = vmatpush.msra.mxu0 %v903
  %1120 = vmatpush.msra.mxu0 %v899
  %1121 = vmatpush.msra.mxu0 %v895
  %1122 = vmatmul.f32.gmra.mxu0 %v1105
  %v1123 = vpop.f32.mrf.mxu0
  %v1124 = vadd.f32 0.0, %v1123
  %1125 = vdwg.mxu0
  %1126 = vmatpush.msra.mxu0 %v956
  %1127 = vmatpush.msra.mxu0 %v952
  %1128 = vmatpush.msra.mxu0 %v948
  %1129 = vmatpush.msra.mxu0 %v944
  %1130 = vmatpush.msra.mxu0 %v940
  %1131 = vmatpush.msra.mxu0 %v936
  %1132 = vmatpush.msra.mxu0 %v932
  %1133 = vmatpush.msra.mxu0 %v928
  %1134 = vmatpush.msra.mxu0 %v924
  %1135 = vmatpush.msra.mxu0 %v920
  %1136 = vmatpush.msra.mxu0 %v916
  %1137 = vmatpush.msra.mxu0 %v912
  %1138 = vmatpush.msra.mxu0 %v908
  %1139 = vmatpush.msra.mxu0 %v904
  %1140 = vmatpush.msra.mxu0 %v900
  %1141 = vmatpush.msra.mxu0 %v896
  %1142 = vmatmul.f32.gmra.mxu0 %v1105
  %v1143 = vpop.f32.mrf.mxu0
  %v1144 = vadd.f32 0.0, %v1143
  %1145 = vdwg.mxu0
  %1146 = vmatpush.msra.mxu0 %v957
  %1147 = vmatpush.msra.mxu0 %v953
  %1148 = vmatpush.msra.mxu0 %v949
  %1149 = vmatpush.msra.mxu0 %v945
  %1150 = vmatpush.msra.mxu0 %v941
  %1151 = vmatpush.msra.mxu0 %v937
  %1152 = vmatpush.msra.mxu0 %v933
  %1153 = vmatpush.msra.mxu0 %v929
  %1154 = vmatpush.msra.mxu0 %v925
  %1155 = vmatpush.msra.mxu0 %v921
  %1156 = vmatpush.msra.mxu0 %v917
  %1157 = vmatpush.msra.mxu0 %v913
  %1158 = vmatpush.msra.mxu0 %v909
  %1159 = vmatpush.msra.mxu0 %v905
  %1160 = vmatpush.msra.mxu0 %v901
  %1161 = vmatpush.msra.mxu0 %v897
  %1162 = vmatmul.f32.gmra.mxu0 %v1105
  %v1163 = vpop.f32.mrf.mxu0
  %v1164 = vadd.f32 0.0, %v1163
  %1165 = vdwg.mxu0
  %1166 = vmatpush.msra.mxu0 %v958
  %1167 = vmatpush.msra.mxu0 %v954
  %1168 = vmatpush.msra.mxu0 %v950
  %1169 = vmatpush.msra.mxu0 %v946
  %1170 = vmatpush.msra.mxu0 %v942
  %1171 = vmatpush.msra.mxu0 %v938
  %1172 = vmatpush.msra.mxu0 %v934
  %1173 = vmatpush.msra.mxu0 %v930
  %1174 = vmatpush.msra.mxu0 %v926
  %1175 = vmatpush.msra.mxu0 %v922
  %1176 = vmatpush.msra.mxu0 %v918
  %1177 = vmatpush.msra.mxu0 %v914
  %1178 = vmatpush.msra.mxu0 %v910
  %1179 = vmatpush.msra.mxu0 %v906
  %1180 = vmatpush.msra.mxu0 %v902
  %1181 = vmatpush.msra.mxu0 %v898
  %1182 = vmatmul.f32.gmra.mxu0 %v1105
  %v1183 = vpop.f32.mrf.mxu0
  %v1184 = vadd.f32 0.0, %v1183
  %1185 = vdwg.mxu0
  %v1186 = vadd.f32 %v629, %v1124
  %v1187 = vadd.f32 %v711, %v1144
  %v1188 = vadd.f32 %v793, %v1164
  %v1189 = vadd.f32 %v875, %v1184
  %v1190 = vxor.u32 %v1186, 2147483648
  %v1191 = vxor.u32 %v1187, 2147483648
  %v1192 = vxor.u32 %v1189, 2147483648
  %v1193 = vmul.f32 %v1190, 1.442695
  %v1194 = vpow.pop %v1193
  %v1195 = vmul.f32 %v1191, 1.442695
  %v1196 = vpow.pop %v1195
  %v1197 = vmul.f32 %v1192, 1.442695
  %v1198 = vpow.pop %v1197
  %v1199 = vadd.f32 %v1194, 1.0
  %v1200 = vadd.f32 %v1196, 1.0
  %v1201 = vadd.f32 %v1198, 1.0
  %v1202 = vrcp.pop %v1199
  %v1203 = vmul.f32 %v1199, %v1202
  %v1204 = vsub.f32 1.0, %v1203
  %v1205 = vmul.f32 %v1202, %v1204
  %v1206 = vadd.f32 %v1202, %v1205
  %vm1207 = vweird.f32 %v1199
  %vm1208 = vweird.f32 %v1202
  %vm1209 = vmor %vm1207, %vm1208
  %v1210 = vsel %vm1209, %v1202, %v1206
  %v1211 = vand.u32 2147483647, %v1199
  %vm1212 = vcmp.eq.f32.partialorder %v1211, 8.507059e+37
  %v1213 = vand.u32 %v1199, 2147483648
  %v1214 = vor.u32 1.1754944e-38, %v1213
  %v1215 = vsel %vm1212, %v1214, %v1210
  %v1216 = vmul.f32 1.0, %v1215
  %v1217 = vrcp.pop %v1200
  %v1218 = vmul.f32 %v1200, %v1217
  %v1219 = vsub.f32 1.0, %v1218
  %v1220 = vmul.f32 %v1217, %v1219
  %v1221 = vadd.f32 %v1217, %v1220
  %vm1222 = vweird.f32 %v1200
  %vm1223 = vweird.f32 %v1217
  %vm1224 = vmor %vm1222, %vm1223
  %v1225 = vsel %vm1224, %v1217, %v1221
  %v1226 = vand.u32 2147483647, %v1200
  %vm1227 = vcmp.eq.f32.partialorder %v1226, 8.507059e+37
  %v1228 = vand.u32 %v1200, 2147483648
  %v1229 = vor.u32 1.1754944e-38, %v1228
  %v1230 = vsel %vm1227, %v1229, %v1225
  %v1231 = vmul.f32 1.0, %v1230
  %v1232 = vrcp.pop %v1201
  %v1233 = vmul.f32 %v1201, %v1232
  %v1234 = vsub.f32 1.0, %v1233
  %v1235 = vmul.f32 %v1232, %v1234
  %v1236 = vadd.f32 %v1232, %v1235
  %vm1237 = vweird.f32 %v1201
  %vm1238 = vweird.f32 %v1232
  %vm1239 = vmor %vm1237, %vm1238
  %v1240 = vsel %vm1239, %v1232, %v1236
  %v1241 = vand.u32 2147483647, %v1201
  %vm1242 = vcmp.eq.f32.partialorder %v1241, 8.507059e+37
  %v1243 = vand.u32 %v1201, 2147483648
  %v1244 = vor.u32 1.1754944e-38, %v1243
  %v1245 = vsel %vm1242, %v1244, %v1240
  %v1246 = vmul.f32 1.0, %v1245
  %v1247 = vtanh.pop %v1188
  %v1248 = vmul.f32 %v1231, %v1103
  %v1249 = vmul.f32 %v1216, %v1247
  %v1250 = vadd.f32 %v1248, %v1249
  %v1251 = vtanh.pop %v1250
  %v1252 = vmul.f32 %v1246, %v1251
  %1253 = vmatpush.msra.mxu0 %v955
  %1254 = vmatpush.msra.mxu0 %v951
  %1255 = vmatpush.msra.mxu0 %v947
  %1256 = vmatpush.msra.mxu0 %v943
  %1257 = vmatpush.msra.mxu0 %v939
  %1258 = vmatpush.msra.mxu0 %v935
  %1259 = vmatpush.msra.mxu0 %v931
  %1260 = vmatpush.msra.mxu0 %v927
  %1261 = vmatpush.msra.mxu0 %v923
  %1262 = vmatpush.msra.mxu0 %v919
  %1263 = vmatpush.msra.mxu0 %v915
  %1264 = vmatpush.msra.mxu0 %v911
  %1265 = vmatpush.msra.mxu0 %v907
  %1266 = vmatpush.msra.mxu0 %v903
  %1267 = vmatpush.msra.mxu0 %v899
  %1268 = vmatpush.msra.mxu0 %v895
  %1269 = vmatmul.f32.gmra.mxu0 %v1252
  %v1270 = vpop.f32.mrf.mxu0
  %v1271 = vadd.f32 0.0, %v1270
  %1272 = vdwg.mxu0
  %1273 = vmatpush.msra.mxu0 %v956
  %1274 = vmatpush.msra.mxu0 %v952
  %1275 = vmatpush.msra.mxu0 %v948
  %1276 = vmatpush.msra.mxu0 %v944
  %1277 = vmatpush.msra.mxu0 %v940
  %1278 = vmatpush.msra.mxu0 %v936
  %1279 = vmatpush.msra.mxu0 %v932
  %1280 = vmatpush.msra.mxu0 %v928
  %1281 = vmatpush.msra.mxu0 %v924
  %1282 = vmatpush.msra.mxu0 %v920
  %1283 = vmatpush.msra.mxu0 %v916
  %1284 = vmatpush.msra.mxu0 %v912
  %1285 = vmatpush.msra.mxu0 %v908
  %1286 = vmatpush.msra.mxu0 %v904
  %1287 = vmatpush.msra.mxu0 %v900
  %1288 = vmatpush.msra.mxu0 %v896
  %1289 = vmatmul.f32.gmra.mxu0 %v1252
  %v1290 = vpop.f32.mrf.mxu0
  %v1291 = vadd.f32 0.0, %v1290
  %1292 = vdwg.mxu0
  %1293 = vmatpush.msra.mxu0 %v957
  %1294 = vmatpush.msra.mxu0 %v953
  %1295 = vmatpush.msra.mxu0 %v949
  %1296 = vmatpush.msra.mxu0 %v945
  %1297 = vmatpush.msra.mxu0 %v941
  %1298 = vmatpush.msra.mxu0 %v937
  %1299 = vmatpush.msra.mxu0 %v933
  %1300 = vmatpush.msra.mxu0 %v929
  %1301 = vmatpush.msra.mxu0 %v925
  %1302 = vmatpush.msra.mxu0 %v921
  %1303 = vmatpush.msra.mxu0 %v917
  %1304 = vmatpush.msra.mxu0 %v913
  %1305 = vmatpush.msra.mxu0 %v909
  %1306 = vmatpush.msra.mxu0 %v905
  %1307 = vmatpush.msra.mxu0 %v901
  %1308 = vmatpush.msra.mxu0 %v897
  %1309 = vmatmul.f32.gmra.mxu0 %v1252
  %v1310 = vpop.f32.mrf.mxu0
  %v1311 = vadd.f32 0.0, %v1310
  %1312 = vdwg.mxu0
  %1313 = vmatpush.msra.mxu0 %v958
  %1314 = vmatpush.msra.mxu0 %v954
  %1315 = vmatpush.msra.mxu0 %v950
  %1316 = vmatpush.msra.mxu0 %v946
  %1317 = vmatpush.msra.mxu0 %v942
  %1318 = vmatpush.msra.mxu0 %v938
  %1319 = vmatpush.msra.mxu0 %v934
  %1320 = vmatpush.msra.mxu0 %v930
  %1321 = vmatpush.msra.mxu0 %v926
  %1322 = vmatpush.msra.mxu0 %v922
  %1323 = vmatpush.msra.mxu0 %v918
  %1324 = vmatpush.msra.mxu0 %v914
  %1325 = vmatpush.msra.mxu0 %v910
  %1326 = vmatpush.msra.mxu0 %v906
  %1327 = vmatpush.msra.mxu0 %v902
  %1328 = vmatpush.msra.mxu0 %v898
  %1329 = vmatmul.f32.gmra.mxu0 %v1252
  %v1330 = vpop.f32.mrf.mxu0
  %v1331 = vadd.f32 0.0, %v1330
  %1332 = vdwg.mxu0
  %v1333 = vadd.f32 %v632, %v1271
  %v1334 = vadd.f32 %v714, %v1291
  %v1335 = vadd.f32 %v796, %v1311
  %v1336 = vadd.f32 %v878, %v1331
  %v1337 = vxor.u32 %v1333, 2147483648
  %v1338 = vxor.u32 %v1334, 2147483648
  %v1339 = vxor.u32 %v1336, 2147483648
  %v1340 = vmul.f32 %v1337, 1.442695
  %v1341 = vpow.pop %v1340
  %v1342 = vmul.f32 %v1338, 1.442695
  %v1343 = vpow.pop %v1342
  %v1344 = vmul.f32 %v1339, 1.442695
  %v1345 = vpow.pop %v1344
  %v1346 = vadd.f32 %v1341, 1.0
  %v1347 = vadd.f32 %v1343, 1.0
  %v1348 = vadd.f32 %v1345, 1.0
  %v1349 = vrcp.pop %v1346
  %v1350 = vmul.f32 %v1346, %v1349
  %v1351 = vsub.f32 1.0, %v1350
  %v1352 = vmul.f32 %v1349, %v1351
  %v1353 = vadd.f32 %v1349, %v1352
  %vm1354 = vweird.f32 %v1346
  %vm1355 = vweird.f32 %v1349
  %vm1356 = vmor %vm1354, %vm1355
  %v1357 = vsel %vm1356, %v1349, %v1353
  %v1358 = vand.u32 2147483647, %v1346
  %vm1359 = vcmp.eq.f32.partialorder %v1358, 8.507059e+37
  %v1360 = vand.u32 %v1346, 2147483648
  %v1361 = vor.u32 1.1754944e-38, %v1360
  %v1362 = vsel %vm1359, %v1361, %v1357
  %v1363 = vmul.f32 1.0, %v1362
  %v1364 = vrcp.pop %v1347
  %v1365 = vmul.f32 %v1347, %v1364
  %v1366 = vsub.f32 1.0, %v1365
  %v1367 = vmul.f32 %v1364, %v1366
  %v1368 = vadd.f32 %v1364, %v1367
  %vm1369 = vweird.f32 %v1347
  %vm1370 = vweird.f32 %v1364
  %vm1371 = vmor %vm1369, %vm1370
  %v1372 = vsel %vm1371, %v1364, %v1368
  %v1373 = vand.u32 2147483647, %v1347
  %vm1374 = vcmp.eq.f32.partialorder %v1373, 8.507059e+37
  %v1375 = vand.u32 %v1347, 2147483648
  %v1376 = vor.u32 1.1754944e-38, %v1375
  %v1377 = vsel %vm1374, %v1376, %v1372
  %v1378 = vmul.f32 1.0, %v1377
  %v1379 = vrcp.pop %v1348
  %v1380 = vmul.f32 %v1348, %v1379
  %v1381 = vsub.f32 1.0, %v1380
  %v1382 = vmul.f32 %v1379, %v1381
  %v1383 = vadd.f32 %v1379, %v1382
  %vm1384 = vweird.f32 %v1348
  %vm1385 = vweird.f32 %v1379
  %vm1386 = vmor %vm1384, %vm1385
  %v1387 = vsel %vm1386, %v1379, %v1383
  %v1388 = vand.u32 2147483647, %v1348
  %vm1389 = vcmp.eq.f32.partialorder %v1388, 8.507059e+37
  %v1390 = vand.u32 %v1348, 2147483648
  %v1391 = vor.u32 1.1754944e-38, %v1390
  %v1392 = vsel %vm1389, %v1391, %v1387
  %v1393 = vmul.f32 1.0, %v1392
  %v1394 = vtanh.pop %v1335
  %v1395 = vmul.f32 %v1378, %v1250
  %v1396 = vmul.f32 %v1363, %v1394
  %v1397 = vadd.f32 %v1395, %v1396
  %v1398 = vtanh.pop %v1397
  %v1399 = vmul.f32 %v1393, %v1398
  %1400 = vmatpush.msra.mxu0 %v955
  %1401 = vmatpush.msra.mxu0 %v951
  %1402 = vmatpush.msra.mxu0 %v947
  %1403 = vmatpush.msra.mxu0 %v943
  %1404 = vmatpush.msra.mxu0 %v939
  %1405 = vmatpush.msra.mxu0 %v935
  %1406 = vmatpush.msra.mxu0 %v931
  %1407 = vmatpush.msra.mxu0 %v927
  %1408 = vmatpush.msra.mxu0 %v923
  %1409 = vmatpush.msra.mxu0 %v919
  %1410 = vmatpush.msra.mxu0 %v915
  %1411 = vmatpush.msra.mxu0 %v911
  %1412 = vmatpush.msra.mxu0 %v907
  %1413 = vmatpush.msra.mxu0 %v903
  %1414 = vmatpush.msra.mxu0 %v899
  %1415 = vmatpush.msra.mxu0 %v895
  %1416 = vmatmul.f32.gmra.mxu0 %v1399
  %v1417 = vpop.f32.mrf.mxu0
  %v1418 = vadd.f32 0.0, %v1417
  %1419 = vdwg.mxu0
  %1420 = vmatpush.msra.mxu0 %v956
  %1421 = vmatpush.msra.mxu0 %v952
  %1422 = vmatpush.msra.mxu0 %v948
  %1423 = vmatpush.msra.mxu0 %v944
  %1424 = vmatpush.msra.mxu0 %v940
  %1425 = vmatpush.msra.mxu0 %v936
  %1426 = vmatpush.msra.mxu0 %v932
  %1427 = vmatpush.msra.mxu0 %v928
  %1428 = vmatpush.msra.mxu0 %v924
  %1429 = vmatpush.msra.mxu0 %v920
  %1430 = vmatpush.msra.mxu0 %v916
  %1431 = vmatpush.msra.mxu0 %v912
  %1432 = vmatpush.msra.mxu0 %v908
  %1433 = vmatpush.msra.mxu0 %v904
  %1434 = vmatpush.msra.mxu0 %v900
  %1435 = vmatpush.msra.mxu0 %v896
  %1436 = vmatmul.f32.gmra.mxu0 %v1399
  %v1437 = vpop.f32.mrf.mxu0
  %v1438 = vadd.f32 0.0, %v1437
  %1439 = vdwg.mxu0
  %1440 = vmatpush.msra.mxu0 %v957
  %1441 = vmatpush.msra.mxu0 %v953
  %1442 = vmatpush.msra.mxu0 %v949
  %1443 = vmatpush.msra.mxu0 %v945
  %1444 = vmatpush.msra.mxu0 %v941
  %1445 = vmatpush.msra.mxu0 %v937
  %1446 = vmatpush.msra.mxu0 %v933
  %1447 = vmatpush.msra.mxu0 %v929
  %1448 = vmatpush.msra.mxu0 %v925
  %1449 = vmatpush.msra.mxu0 %v921
  %1450 = vmatpush.msra.mxu0 %v917
  %1451 = vmatpush.msra.mxu0 %v913
  %1452 = vmatpush.msra.mxu0 %v909
  %1453 = vmatpush.msra.mxu0 %v905
  %1454 = vmatpush.msra.mxu0 %v901
  %1455 = vmatpush.msra.mxu0 %v897
  %1456 = vmatmul.f32.gmra.mxu0 %v1399
  %v1457 = vpop.f32.mrf.mxu0
  %v1458 = vadd.f32 0.0, %v1457
  %1459 = vdwg.mxu0
  %1460 = vmatpush.msra.mxu0 %v958
  %1461 = vmatpush.msra.mxu0 %v954
  %1462 = vmatpush.msra.mxu0 %v950
  %1463 = vmatpush.msra.mxu0 %v946
  %1464 = vmatpush.msra.mxu0 %v942
  %1465 = vmatpush.msra.mxu0 %v938
  %1466 = vmatpush.msra.mxu0 %v934
  %1467 = vmatpush.msra.mxu0 %v930
  %1468 = vmatpush.msra.mxu0 %v926
  %1469 = vmatpush.msra.mxu0 %v922
  %1470 = vmatpush.msra.mxu0 %v918
  %1471 = vmatpush.msra.mxu0 %v914
  %1472 = vmatpush.msra.mxu0 %v910
  %1473 = vmatpush.msra.mxu0 %v906
  %1474 = vmatpush.msra.mxu0 %v902
  %1475 = vmatpush.msra.mxu0 %v898
  %1476 = vmatmul.f32.gmra.mxu0 %v1399
  %v1477 = vpop.f32.mrf.mxu0
  %v1478 = vadd.f32 0.0, %v1477
  %1479 = vdwg.mxu0
  %v1480 = vadd.f32 %v635, %v1418
  %v1481 = vadd.f32 %v717, %v1438
  %v1482 = vadd.f32 %v799, %v1458
  %v1483 = vadd.f32 %v881, %v1478
  %v1484 = vxor.u32 %v1480, 2147483648
  %v1485 = vxor.u32 %v1481, 2147483648
  %v1486 = vxor.u32 %v1483, 2147483648
  %v1487 = vmul.f32 %v1484, 1.442695
  %v1488 = vpow.pop %v1487
  %v1489 = vmul.f32 %v1485, 1.442695
  %v1490 = vpow.pop %v1489
  %v1491 = vmul.f32 %v1486, 1.442695
  %v1492 = vpow.pop %v1491
  %v1493 = vadd.f32 %v1488, 1.0
  %v1494 = vadd.f32 %v1490, 1.0
  %v1495 = vadd.f32 %v1492, 1.0
  %v1496 = vrcp.pop %v1493
  %v1497 = vmul.f32 %v1493, %v1496
  %v1498 = vsub.f32 1.0, %v1497
  %v1499 = vmul.f32 %v1496, %v1498
  %v1500 = vadd.f32 %v1496, %v1499
  %vm1501 = vweird.f32 %v1493
  %vm1502 = vweird.f32 %v1496
  %vm1503 = vmor %vm1501, %vm1502
  %v1504 = vsel %vm1503, %v1496, %v1500
  %v1505 = vand.u32 2147483647, %v1493
  %vm1506 = vcmp.eq.f32.partialorder %v1505, 8.507059e+37
  %v1507 = vand.u32 %v1493, 2147483648
  %v1508 = vor.u32 1.1754944e-38, %v1507
  %v1509 = vsel %vm1506, %v1508, %v1504
  %v1510 = vmul.f32 1.0, %v1509
  %v1511 = vrcp.pop %v1494
  %v1512 = vmul.f32 %v1494, %v1511
  %v1513 = vsub.f32 1.0, %v1512
  %v1514 = vmul.f32 %v1511, %v1513
  %v1515 = vadd.f32 %v1511, %v1514
  %vm1516 = vweird.f32 %v1494
  %vm1517 = vweird.f32 %v1511
  %vm1518 = vmor %vm1516, %vm1517
  %v1519 = vsel %vm1518, %v1511, %v1515
  %v1520 = vand.u32 2147483647, %v1494
  %vm1521 = vcmp.eq.f32.partialorder %v1520, 8.507059e+37
  %v1522 = vand.u32 %v1494, 2147483648
  %v1523 = vor.u32 1.1754944e-38, %v1522
  %v1524 = vsel %vm1521, %v1523, %v1519
  %v1525 = vmul.f32 1.0, %v1524
  %v1526 = vrcp.pop %v1495
  %v1527 = vmul.f32 %v1495, %v1526
  %v1528 = vsub.f32 1.0, %v1527
  %v1529 = vmul.f32 %v1526, %v1528
  %v1530 = vadd.f32 %v1526, %v1529
  %vm1531 = vweird.f32 %v1495
  %vm1532 = vweird.f32 %v1526
  %vm1533 = vmor %vm1531, %vm1532
  %v1534 = vsel %vm1533, %v1526, %v1530
  %v1535 = vand.u32 2147483647, %v1495
  %vm1536 = vcmp.eq.f32.partialorder %v1535, 8.507059e+37
  %v1537 = vand.u32 %v1495, 2147483648
  %v1538 = vor.u32 1.1754944e-38, %v1537
  %v1539 = vsel %vm1536, %v1538, %v1534
  %v1540 = vmul.f32 1.0, %v1539
  %v1541 = vtanh.pop %v1482
  %v1542 = vmul.f32 %v1525, %v1397
  %v1543 = vmul.f32 %v1510, %v1541
  %v1544 = vadd.f32 %v1542, %v1543
  %v1545 = vtanh.pop %v1544
  %v1546 = vmul.f32 %v1540, %v1545
  %1547 = vmatpush.msra.mxu0 %v955
  %1548 = vmatpush.msra.mxu0 %v951
  %1549 = vmatpush.msra.mxu0 %v947
  %1550 = vmatpush.msra.mxu0 %v943
  %1551 = vmatpush.msra.mxu0 %v939
  %1552 = vmatpush.msra.mxu0 %v935
  %1553 = vmatpush.msra.mxu0 %v931
  %1554 = vmatpush.msra.mxu0 %v927
  %1555 = vmatpush.msra.mxu0 %v923
  %1556 = vmatpush.msra.mxu0 %v919
  %1557 = vmatpush.msra.mxu0 %v915
  %1558 = vmatpush.msra.mxu0 %v911
  %1559 = vmatpush.msra.mxu0 %v907
  %1560 = vmatpush.msra.mxu0 %v903
  %1561 = vmatpush.msra.mxu0 %v899
  %1562 = vmatpush.msra.mxu0 %v895
  %1563 = vmatmul.f32.gmra.mxu0 %v1546
  %v1564 = vpop.f32.mrf.mxu0
  %v1565 = vadd.f32 0.0, %v1564
  %1566 = vdwg.mxu0
  %1567 = vmatpush.msra.mxu0 %v956
  %1568 = vmatpush.msra.mxu0 %v952
  %1569 = vmatpush.msra.mxu0 %v948
  %1570 = vmatpush.msra.mxu0 %v944
  %1571 = vmatpush.msra.mxu0 %v940
  %1572 = vmatpush.msra.mxu0 %v936
  %1573 = vmatpush.msra.mxu0 %v932
  %1574 = vmatpush.msra.mxu0 %v928
  %1575 = vmatpush.msra.mxu0 %v924
  %1576 = vmatpush.msra.mxu0 %v920
  %1577 = vmatpush.msra.mxu0 %v916
  %1578 = vmatpush.msra.mxu0 %v912
  %1579 = vmatpush.msra.mxu0 %v908
  %1580 = vmatpush.msra.mxu0 %v904
  %1581 = vmatpush.msra.mxu0 %v900
  %1582 = vmatpush.msra.mxu0 %v896
  %1583 = vmatmul.f32.gmra.mxu0 %v1546
  %v1584 = vpop.f32.mrf.mxu0
  %v1585 = vadd.f32 0.0, %v1584
  %1586 = vdwg.mxu0
  %1587 = vmatpush.msra.mxu0 %v957
  %1588 = vmatpush.msra.mxu0 %v953
  %1589 = vmatpush.msra.mxu0 %v949
  %1590 = vmatpush.msra.mxu0 %v945
  %1591 = vmatpush.msra.mxu0 %v941
  %1592 = vmatpush.msra.mxu0 %v937
  %1593 = vmatpush.msra.mxu0 %v933
  %1594 = vmatpush.msra.mxu0 %v929
  %1595 = vmatpush.msra.mxu0 %v925
  %1596 = vmatpush.msra.mxu0 %v921
  %1597 = vmatpush.msra.mxu0 %v917
  %1598 = vmatpush.msra.mxu0 %v913
  %1599 = vmatpush.msra.mxu0 %v909
  %1600 = vmatpush.msra.mxu0 %v905
  %1601 = vmatpush.msra.mxu0 %v901
  %1602 = vmatpush.msra.mxu0 %v897
  %1603 = vmatmul.f32.gmra.mxu0 %v1546
  %v1604 = vpop.f32.mrf.mxu0
  %v1605 = vadd.f32 0.0, %v1604
  %1606 = vdwg.mxu0
  %1607 = vmatpush.msra.mxu0 %v958
  %1608 = vmatpush.msra.mxu0 %v954
  %1609 = vmatpush.msra.mxu0 %v950
  %1610 = vmatpush.msra.mxu0 %v946
  %1611 = vmatpush.msra.mxu0 %v942
  %1612 = vmatpush.msra.mxu0 %v938
  %1613 = vmatpush.msra.mxu0 %v934
  %1614 = vmatpush.msra.mxu0 %v930
  %1615 = vmatpush.msra.mxu0 %v926
  %1616 = vmatpush.msra.mxu0 %v922
  %1617 = vmatpush.msra.mxu0 %v918
  %1618 = vmatpush.msra.mxu0 %v914
  %1619 = vmatpush.msra.mxu0 %v910
  %1620 = vmatpush.msra.mxu0 %v906
  %1621 = vmatpush.msra.mxu0 %v902
  %1622 = vmatpush.msra.mxu0 %v898
  %1623 = vmatmul.f32.gmra.mxu0 %v1546
  %v1624 = vpop.f32.mrf.mxu0
  %v1625 = vadd.f32 0.0, %v1624
  %1626 = vdwg.mxu0
  %v1627 = vadd.f32 %v638, %v1565
  %v1628 = vadd.f32 %v720, %v1585
  %v1629 = vadd.f32 %v802, %v1605
  %v1630 = vadd.f32 %v884, %v1625
  %v1631 = vxor.u32 %v1627, 2147483648
  %v1632 = vxor.u32 %v1628, 2147483648
  %v1633 = vxor.u32 %v1630, 2147483648
  %v1634 = vmul.f32 %v1631, 1.442695
  %v1635 = vpow.pop %v1634
  %v1636 = vmul.f32 %v1632, 1.442695
  %v1637 = vpow.pop %v1636
  %v1638 = vmul.f32 %v1633, 1.442695
  %v1639 = vpow.pop %v1638
  %v1640 = vadd.f32 %v1635, 1.0
  %v1641 = vadd.f32 %v1637, 1.0
  %v1642 = vadd.f32 %v1639, 1.0
  %v1643 = vrcp.pop %v1640
  %v1644 = vmul.f32 %v1640, %v1643
  %v1645 = vsub.f32 1.0, %v1644
  %v1646 = vmul.f32 %v1643, %v1645
  %v1647 = vadd.f32 %v1643, %v1646
  %vm1648 = vweird.f32 %v1640
  %vm1649 = vweird.f32 %v1643
  %vm1650 = vmor %vm1648, %vm1649
  %v1651 = vsel %vm1650, %v1643, %v1647
  %v1652 = vand.u32 2147483647, %v1640
  %vm1653 = vcmp.eq.f32.partialorder %v1652, 8.507059e+37
  %v1654 = vand.u32 %v1640, 2147483648
  %v1655 = vor.u32 1.1754944e-38, %v1654
  %v1656 = vsel %vm1653, %v1655, %v1651
  %v1657 = vmul.f32 1.0, %v1656
  %v1658 = vrcp.pop %v1641
  %v1659 = vmul.f32 %v1641, %v1658
  %v1660 = vsub.f32 1.0, %v1659
  %v1661 = vmul.f32 %v1658, %v1660
  %v1662 = vadd.f32 %v1658, %v1661
  %vm1663 = vweird.f32 %v1641
  %vm1664 = vweird.f32 %v1658
  %vm1665 = vmor %vm1663, %vm1664
  %v1666 = vsel %vm1665, %v1658, %v1662
  %v1667 = vand.u32 2147483647, %v1641
  %vm1668 = vcmp.eq.f32.partialorder %v1667, 8.507059e+37
  %v1669 = vand.u32 %v1641, 2147483648
  %v1670 = vor.u32 1.1754944e-38, %v1669
  %v1671 = vsel %vm1668, %v1670, %v1666
  %v1672 = vmul.f32 1.0, %v1671
  %v1673 = vrcp.pop %v1642
  %v1674 = vmul.f32 %v1642, %v1673
  %v1675 = vsub.f32 1.0, %v1674
  %v1676 = vmul.f32 %v1673, %v1675
  %v1677 = vadd.f32 %v1673, %v1676
  %vm1678 = vweird.f32 %v1642
  %vm1679 = vweird.f32 %v1673
  %vm1680 = vmor %vm1678, %vm1679
  %v1681 = vsel %vm1680, %v1673, %v1677
  %v1682 = vand.u32 2147483647, %v1642
  %vm1683 = vcmp.eq.f32.partialorder %v1682, 8.507059e+37
  %v1684 = vand.u32 %v1642, 2147483648
  %v1685 = vor.u32 1.1754944e-38, %v1684
  %v1686 = vsel %vm1683, %v1685, %v1681
  %v1687 = vmul.f32 1.0, %v1686
  %v1688 = vtanh.pop %v1629
  %v1689 = vmul.f32 %v1672, %v1544
  %v1690 = vmul.f32 %v1657, %v1688
  %v1691 = vadd.f32 %v1689, %v1690
  %v1692 = vtanh.pop %v1691
  %v1693 = vmul.f32 %v1687, %v1692
  %1694 = vmatpush.msra.mxu0 %v955
  %1695 = vmatpush.msra.mxu0 %v951
  %1696 = vmatpush.msra.mxu0 %v947
  %1697 = vmatpush.msra.mxu0 %v943
  %1698 = vmatpush.msra.mxu0 %v939
  %1699 = vmatpush.msra.mxu0 %v935
  %1700 = vmatpush.msra.mxu0 %v931
  %1701 = vmatpush.msra.mxu0 %v927
  %1702 = vmatpush.msra.mxu0 %v923
  %1703 = vmatpush.msra.mxu0 %v919
  %1704 = vmatpush.msra.mxu0 %v915
  %1705 = vmatpush.msra.mxu0 %v911
  %1706 = vmatpush.msra.mxu0 %v907
  %1707 = vmatpush.msra.mxu0 %v903
  %1708 = vmatpush.msra.mxu0 %v899
  %1709 = vmatpush.msra.mxu0 %v895
  %1710 = vmatmul.f32.gmra.mxu0 %v1693
  %v1711 = vpop.f32.mrf.mxu0
  %v1712 = vadd.f32 0.0, %v1711
  %1713 = vdwg.mxu0
  %1714 = vmatpush.msra.mxu0 %v956
  %1715 = vmatpush.msra.mxu0 %v952
  %1716 = vmatpush.msra.mxu0 %v948
  %1717 = vmatpush.msra.mxu0 %v944
  %1718 = vmatpush.msra.mxu0 %v940
  %1719 = vmatpush.msra.mxu0 %v936
  %1720 = vmatpush.msra.mxu0 %v932
  %1721 = vmatpush.msra.mxu0 %v928
  %1722 = vmatpush.msra.mxu0 %v924
  %1723 = vmatpush.msra.mxu0 %v920
  %1724 = vmatpush.msra.mxu0 %v916
  %1725 = vmatpush.msra.mxu0 %v912
  %1726 = vmatpush.msra.mxu0 %v908
  %1727 = vmatpush.msra.mxu0 %v904
  %1728 = vmatpush.msra.mxu0 %v900
  %1729 = vmatpush.msra.mxu0 %v896
  %1730 = vmatmul.f32.gmra.mxu0 %v1693
  %v1731 = vpop.f32.mrf.mxu0
  %v1732 = vadd.f32 0.0, %v1731
  %1733 = vdwg.mxu0
  %1734 = vmatpush.msra.mxu0 %v957
  %1735 = vmatpush.msra.mxu0 %v953
  %1736 = vmatpush.msra.mxu0 %v949
  %1737 = vmatpush.msra.mxu0 %v945
  %1738 = vmatpush.msra.mxu0 %v941
  %1739 = vmatpush.msra.mxu0 %v937
  %1740 = vmatpush.msra.mxu0 %v933
  %1741 = vmatpush.msra.mxu0 %v929
  %1742 = vmatpush.msra.mxu0 %v925
  %1743 = vmatpush.msra.mxu0 %v921
  %1744 = vmatpush.msra.mxu0 %v917
  %1745 = vmatpush.msra.mxu0 %v913
  %1746 = vmatpush.msra.mxu0 %v909
  %1747 = vmatpush.msra.mxu0 %v905
  %1748 = vmatpush.msra.mxu0 %v901
  %1749 = vmatpush.msra.mxu0 %v897
  %1750 = vmatmul.f32.gmra.mxu0 %v1693
  %v1751 = vpop.f32.mrf.mxu0
  %v1752 = vadd.f32 0.0, %v1751
  %1753 = vdwg.mxu0
  %1754 = vmatpush.msra.mxu0 %v958
  %1755 = vmatpush.msra.mxu0 %v954
  %1756 = vmatpush.msra.mxu0 %v950
  %1757 = vmatpush.msra.mxu0 %v946
  %1758 = vmatpush.msra.mxu0 %v942
  %1759 = vmatpush.msra.mxu0 %v938
  %1760 = vmatpush.msra.mxu0 %v934
  %1761 = vmatpush.msra.mxu0 %v930
  %1762 = vmatpush.msra.mxu0 %v926
  %1763 = vmatpush.msra.mxu0 %v922
  %1764 = vmatpush.msra.mxu0 %v918
  %1765 = vmatpush.msra.mxu0 %v914
  %1766 = vmatpush.msra.mxu0 %v910
  %1767 = vmatpush.msra.mxu0 %v906
  %1768 = vmatpush.msra.mxu0 %v902
  %1769 = vmatpush.msra.mxu0 %v898
  %1770 = vmatmul.f32.gmra.mxu0 %v1693
  %v1771 = vpop.f32.mrf.mxu0
  %v1772 = vadd.f32 0.0, %v1771
  %1773 = vdwg.mxu0
  %v1774 = vadd.f32 %v641, %v1712
  %v1775 = vadd.f32 %v723, %v1732
  %v1776 = vadd.f32 %v805, %v1752
  %v1777 = vadd.f32 %v887, %v1772
  %v1778 = vxor.u32 %v1774, 2147483648
  %v1779 = vxor.u32 %v1775, 2147483648
  %v1780 = vxor.u32 %v1777, 2147483648
  %v1781 = vmul.f32 %v1778, 1.442695
  %v1782 = vpow.pop %v1781
  %v1783 = vmul.f32 %v1779, 1.442695
  %v1784 = vpow.pop %v1783
  %v1785 = vmul.f32 %v1780, 1.442695
  %v1786 = vpow.pop %v1785
  %v1787 = vadd.f32 %v1782, 1.0
  %v1788 = vadd.f32 %v1784, 1.0
  %v1789 = vadd.f32 %v1786, 1.0
  %v1790 = vrcp.pop %v1787
  %v1791 = vmul.f32 %v1787, %v1790
  %v1792 = vsub.f32 1.0, %v1791
  %v1793 = vmul.f32 %v1790, %v1792
  %v1794 = vadd.f32 %v1790, %v1793
  %vm1795 = vweird.f32 %v1787
  %vm1796 = vweird.f32 %v1790
  %vm1797 = vmor %vm1795, %vm1796
  %v1798 = vsel %vm1797, %v1790, %v1794
  %v1799 = vand.u32 2147483647, %v1787
  %vm1800 = vcmp.eq.f32.partialorder %v1799, 8.507059e+37
  %v1801 = vand.u32 %v1787, 2147483648
  %v1802 = vor.u32 1.1754944e-38, %v1801
  %v1803 = vsel %vm1800, %v1802, %v1798
  %v1804 = vmul.f32 1.0, %v1803
  %v1805 = vrcp.pop %v1788
  %v1806 = vmul.f32 %v1788, %v1805
  %v1807 = vsub.f32 1.0, %v1806
  %v1808 = vmul.f32 %v1805, %v1807
  %v1809 = vadd.f32 %v1805, %v1808
  %vm1810 = vweird.f32 %v1788
  %vm1811 = vweird.f32 %v1805
  %vm1812 = vmor %vm1810, %vm1811
  %v1813 = vsel %vm1812, %v1805, %v1809
  %v1814 = vand.u32 2147483647, %v1788
  %vm1815 = vcmp.eq.f32.partialorder %v1814, 8.507059e+37
  %v1816 = vand.u32 %v1788, 2147483648
  %v1817 = vor.u32 1.1754944e-38, %v1816
  %v1818 = vsel %vm1815, %v1817, %v1813
  %v1819 = vmul.f32 1.0, %v1818
  %v1820 = vrcp.pop %v1789
  %v1821 = vmul.f32 %v1789, %v1820
  %v1822 = vsub.f32 1.0, %v1821
  %v1823 = vmul.f32 %v1820, %v1822
  %v1824 = vadd.f32 %v1820, %v1823
  %vm1825 = vweird.f32 %v1789
  %vm1826 = vweird.f32 %v1820
  %vm1827 = vmor %vm1825, %vm1826
  %v1828 = vsel %vm1827, %v1820, %v1824
  %v1829 = vand.u32 2147483647, %v1789
  %vm1830 = vcmp.eq.f32.partialorder %v1829, 8.507059e+37
  %v1831 = vand.u32 %v1789, 2147483648
  %v1832 = vor.u32 1.1754944e-38, %v1831
  %v1833 = vsel %vm1830, %v1832, %v1828
  %v1834 = vmul.f32 1.0, %v1833
  %v1835 = vtanh.pop %v1776
  %v1836 = vmul.f32 %v1819, %v1691
  %v1837 = vmul.f32 %v1804, %v1835
  %v1838 = vadd.f32 %v1836, %v1837
  %v1839 = vtanh.pop %v1838
  %v1840 = vmul.f32 %v1834, %v1839
  %1841 = vmatpush.msra.mxu0 %v955
  %1842 = vmatpush.msra.mxu0 %v951
  %1843 = vmatpush.msra.mxu0 %v947
  %1844 = vmatpush.msra.mxu0 %v943
  %1845 = vmatpush.msra.mxu0 %v939
  %1846 = vmatpush.msra.mxu0 %v935
  %1847 = vmatpush.msra.mxu0 %v931
  %1848 = vmatpush.msra.mxu0 %v927
  %1849 = vmatpush.msra.mxu0 %v923
  %1850 = vmatpush.msra.mxu0 %v919
  %1851 = vmatpush.msra.mxu0 %v915
  %1852 = vmatpush.msra.mxu0 %v911
  %1853 = vmatpush.msra.mxu0 %v907
  %1854 = vmatpush.msra.mxu0 %v903
  %1855 = vmatpush.msra.mxu0 %v899
  %1856 = vmatpush.msra.mxu0 %v895
  %1857 = vmatmul.f32.gmra.mxu0 %v1840
  %v1858 = vpop.f32.mrf.mxu0
  %v1859 = vadd.f32 0.0, %v1858
  %1860 = vdwg.mxu0
  %1861 = vmatpush.msra.mxu0 %v956
  %1862 = vmatpush.msra.mxu0 %v952
  %1863 = vmatpush.msra.mxu0 %v948
  %1864 = vmatpush.msra.mxu0 %v944
  %1865 = vmatpush.msra.mxu0 %v940
  %1866 = vmatpush.msra.mxu0 %v936
  %1867 = vmatpush.msra.mxu0 %v932
  %1868 = vmatpush.msra.mxu0 %v928
  %1869 = vmatpush.msra.mxu0 %v924
  %1870 = vmatpush.msra.mxu0 %v920
  %1871 = vmatpush.msra.mxu0 %v916
  %1872 = vmatpush.msra.mxu0 %v912
  %1873 = vmatpush.msra.mxu0 %v908
  %1874 = vmatpush.msra.mxu0 %v904
  %1875 = vmatpush.msra.mxu0 %v900
  %1876 = vmatpush.msra.mxu0 %v896
  %1877 = vmatmul.f32.gmra.mxu0 %v1840
  %v1878 = vpop.f32.mrf.mxu0
  %v1879 = vadd.f32 0.0, %v1878
  %1880 = vdwg.mxu0
  %1881 = vmatpush.msra.mxu0 %v957
  %1882 = vmatpush.msra.mxu0 %v953
  %1883 = vmatpush.msra.mxu0 %v949
  %1884 = vmatpush.msra.mxu0 %v945
  %1885 = vmatpush.msra.mxu0 %v941
  %1886 = vmatpush.msra.mxu0 %v937
  %1887 = vmatpush.msra.mxu0 %v933
  %1888 = vmatpush.msra.mxu0 %v929
  %1889 = vmatpush.msra.mxu0 %v925
  %1890 = vmatpush.msra.mxu0 %v921
  %1891 = vmatpush.msra.mxu0 %v917
  %1892 = vmatpush.msra.mxu0 %v913
  %1893 = vmatpush.msra.mxu0 %v909
  %1894 = vmatpush.msra.mxu0 %v905
  %1895 = vmatpush.msra.mxu0 %v901
  %1896 = vmatpush.msra.mxu0 %v897
  %1897 = vmatmul.f32.gmra.mxu0 %v1840
  %v1898 = vpop.f32.mrf.mxu0
  %v1899 = vadd.f32 0.0, %v1898
  %1900 = vdwg.mxu0
  %1901 = vmatpush.msra.mxu0 %v958
  %1902 = vmatpush.msra.mxu0 %v954
  %1903 = vmatpush.msra.mxu0 %v950
  %1904 = vmatpush.msra.mxu0 %v946
  %1905 = vmatpush.msra.mxu0 %v942
  %1906 = vmatpush.msra.mxu0 %v938
  %1907 = vmatpush.msra.mxu0 %v934
  %1908 = vmatpush.msra.mxu0 %v930
  %1909 = vmatpush.msra.mxu0 %v926
  %1910 = vmatpush.msra.mxu0 %v922
  %1911 = vmatpush.msra.mxu0 %v918
  %1912 = vmatpush.msra.mxu0 %v914
  %1913 = vmatpush.msra.mxu0 %v910
  %1914 = vmatpush.msra.mxu0 %v906
  %1915 = vmatpush.msra.mxu0 %v902
  %1916 = vmatpush.msra.mxu0 %v898
  %1917 = vmatmul.f32.gmra.mxu0 %v1840
  %v1918 = vpop.f32.mrf.mxu0
  %v1919 = vadd.f32 0.0, %v1918
  %1920 = vdwg.mxu0
  %v1921 = vadd.f32 %v644, %v1859
  %v1922 = vadd.f32 %v726, %v1879
  %v1923 = vadd.f32 %v808, %v1899
  %v1924 = vadd.f32 %v890, %v1919
  %v1925 = vxor.u32 %v1921, 2147483648
  %v1926 = vxor.u32 %v1922, 2147483648
  %v1927 = vxor.u32 %v1924, 2147483648
  %v1928 = vmul.f32 %v1925, 1.442695
  %v1929 = vpow.pop %v1928
  %v1930 = vmul.f32 %v1926, 1.442695
  %v1931 = vpow.pop %v1930
  %v1932 = vmul.f32 %v1927, 1.442695
  %v1933 = vpow.pop %v1932
  %v1934 = vadd.f32 %v1929, 1.0
  %v1935 = vadd.f32 %v1931, 1.0
  %v1936 = vadd.f32 %v1933, 1.0
  %v1937 = vrcp.pop %v1934
  %v1938 = vmul.f32 %v1934, %v1937
  %v1939 = vsub.f32 1.0, %v1938
  %v1940 = vmul.f32 %v1937, %v1939
  %v1941 = vadd.f32 %v1937, %v1940
  %vm1942 = vweird.f32 %v1934
  %vm1943 = vweird.f32 %v1937
  %vm1944 = vmor %vm1942, %vm1943
  %v1945 = vsel %vm1944, %v1937, %v1941
  %v1946 = vand.u32 2147483647, %v1934
  %vm1947 = vcmp.eq.f32.partialorder %v1946, 8.507059e+37
  %v1948 = vand.u32 %v1934, 2147483648
  %v1949 = vor.u32 1.1754944e-38, %v1948
  %v1950 = vsel %vm1947, %v1949, %v1945
  %v1951 = vmul.f32 1.0, %v1950
  %v1952 = vrcp.pop %v1935
  %v1953 = vmul.f32 %v1935, %v1952
  %v1954 = vsub.f32 1.0, %v1953
  %v1955 = vmul.f32 %v1952, %v1954
  %v1956 = vadd.f32 %v1952, %v1955
  %vm1957 = vweird.f32 %v1935
  %vm1958 = vweird.f32 %v1952
  %vm1959 = vmor %vm1957, %vm1958
  %v1960 = vsel %vm1959, %v1952, %v1956
  %v1961 = vand.u32 2147483647, %v1935
  %vm1962 = vcmp.eq.f32.partialorder %v1961, 8.507059e+37
  %v1963 = vand.u32 %v1935, 2147483648
  %v1964 = vor.u32 1.1754944e-38, %v1963
  %v1965 = vsel %vm1962, %v1964, %v1960
  %v1966 = vmul.f32 1.0, %v1965
  %v1967 = vrcp.pop %v1936
  %v1968 = vmul.f32 %v1936, %v1967
  %v1969 = vsub.f32 1.0, %v1968
  %v1970 = vmul.f32 %v1967, %v1969
  %v1971 = vadd.f32 %v1967, %v1970
  %vm1972 = vweird.f32 %v1936
  %vm1973 = vweird.f32 %v1967
  %vm1974 = vmor %vm1972, %vm1973
  %v1975 = vsel %vm1974, %v1967, %v1971
  %v1976 = vand.u32 2147483647, %v1936
  %vm1977 = vcmp.eq.f32.partialorder %v1976, 8.507059e+37
  %v1978 = vand.u32 %v1936, 2147483648
  %v1979 = vor.u32 1.1754944e-38, %v1978
  %v1980 = vsel %vm1977, %v1979, %v1975
  %v1981 = vmul.f32 1.0, %v1980
  %v1982 = vtanh.pop %v1923
  %v1983 = vmul.f32 %v1966, %v1838
  %v1984 = vmul.f32 %v1951, %v1982
  %v1985 = vadd.f32 %v1983, %v1984
  %v1986 = vtanh.pop %v1985
  %v1987 = vmul.f32 %v1981, %v1986
  %1988 = vmatpush.msra.mxu0 %v955
  %1989 = vmatpush.msra.mxu0 %v951
  %1990 = vmatpush.msra.mxu0 %v947
  %1991 = vmatpush.msra.mxu0 %v943
  %1992 = vmatpush.msra.mxu0 %v939
  %1993 = vmatpush.msra.mxu0 %v935
  %1994 = vmatpush.msra.mxu0 %v931
  %1995 = vmatpush.msra.mxu0 %v927
  %1996 = vmatpush.msra.mxu0 %v923
  %1997 = vmatpush.msra.mxu0 %v919
  %1998 = vmatpush.msra.mxu0 %v915
  %1999 = vmatpush.msra.mxu0 %v911
  %2000 = vmatpush.msra.mxu0 %v907
  %2001 = vmatpush.msra.mxu0 %v903
  %2002 = vmatpush.msra.mxu0 %v899
  %2003 = vmatpush.msra.mxu0 %v895
  %2004 = vmatmul.f32.gmra.mxu0 %v1987
  %v2005 = vpop.f32.mrf.mxu0
  %v2006 = vadd.f32 0.0, %v2005
  %2007 = vdwg.mxu0
  %2008 = vmatpush.msra.mxu0 %v956
  %2009 = vmatpush.msra.mxu0 %v952
  %2010 = vmatpush.msra.mxu0 %v948
  %2011 = vmatpush.msra.mxu0 %v944
  %2012 = vmatpush.msra.mxu0 %v940
  %2013 = vmatpush.msra.mxu0 %v936
  %2014 = vmatpush.msra.mxu0 %v932
  %2015 = vmatpush.msra.mxu0 %v928
  %2016 = vmatpush.msra.mxu0 %v924
  %2017 = vmatpush.msra.mxu0 %v920
  %2018 = vmatpush.msra.mxu0 %v916
  %2019 = vmatpush.msra.mxu0 %v912
  %2020 = vmatpush.msra.mxu0 %v908
  %2021 = vmatpush.msra.mxu0 %v904
  %2022 = vmatpush.msra.mxu0 %v900
  %2023 = vmatpush.msra.mxu0 %v896
  %2024 = vmatmul.f32.gmra.mxu0 %v1987
  %v2025 = vpop.f32.mrf.mxu0
  %v2026 = vadd.f32 0.0, %v2025
  %2027 = vdwg.mxu0
  %2028 = vmatpush.msra.mxu0 %v957
  %2029 = vmatpush.msra.mxu0 %v953
  %2030 = vmatpush.msra.mxu0 %v949
  %2031 = vmatpush.msra.mxu0 %v945
  %2032 = vmatpush.msra.mxu0 %v941
  %2033 = vmatpush.msra.mxu0 %v937
  %2034 = vmatpush.msra.mxu0 %v933
  %2035 = vmatpush.msra.mxu0 %v929
  %2036 = vmatpush.msra.mxu0 %v925
  %2037 = vmatpush.msra.mxu0 %v921
  %2038 = vmatpush.msra.mxu0 %v917
  %2039 = vmatpush.msra.mxu0 %v913
  %2040 = vmatpush.msra.mxu0 %v909
  %2041 = vmatpush.msra.mxu0 %v905
  %2042 = vmatpush.msra.mxu0 %v901
  %2043 = vmatpush.msra.mxu0 %v897
  %2044 = vmatmul.f32.gmra.mxu0 %v1987
  %v2045 = vpop.f32.mrf.mxu0
  %v2046 = vadd.f32 0.0, %v2045
  %2047 = vdwg.mxu0
  %2048 = vmatpush.msra.mxu0 %v958
  %2049 = vmatpush.msra.mxu0 %v954
  %2050 = vmatpush.msra.mxu0 %v950
  %2051 = vmatpush.msra.mxu0 %v946
  %2052 = vmatpush.msra.mxu0 %v942
  %2053 = vmatpush.msra.mxu0 %v938
  %2054 = vmatpush.msra.mxu0 %v934
  %2055 = vmatpush.msra.mxu0 %v930
  %2056 = vmatpush.msra.mxu0 %v926
  %2057 = vmatpush.msra.mxu0 %v922
  %2058 = vmatpush.msra.mxu0 %v918
  %2059 = vmatpush.msra.mxu0 %v914
  %2060 = vmatpush.msra.mxu0 %v910
  %2061 = vmatpush.msra.mxu0 %v906
  %2062 = vmatpush.msra.mxu0 %v902
  %2063 = vmatpush.msra.mxu0 %v898
  %2064 = vmatmul.f32.gmra.mxu0 %v1987
  %v2065 = vpop.f32.mrf.mxu0
  %v2066 = vadd.f32 0.0, %v2065
  %2067 = vdwg.mxu0
  %v2068 = vadd.f32 %v647, %v2006
  %v2069 = vadd.f32 %v729, %v2026
  %v2070 = vadd.f32 %v811, %v2046
  %v2071 = vadd.f32 %v893, %v2066
  %v2072 = vxor.u32 %v2068, 2147483648
  %v2073 = vxor.u32 %v2069, 2147483648
  %v2074 = vxor.u32 %v2071, 2147483648
  %v2075 = vmul.f32 %v2072, 1.442695
  %v2076 = vpow.pop %v2075
  %v2077 = vmul.f32 %v2073, 1.442695
  %v2078 = vpow.pop %v2077
  %v2079 = vmul.f32 %v2074, 1.442695
  %v2080 = vpow.pop %v2079
  %v2081 = vadd.f32 %v2076, 1.0
  %v2082 = vadd.f32 %v2078, 1.0
  %v2083 = vadd.f32 %v2080, 1.0
  %v2084 = vrcp.pop %v2081
  %v2085 = vmul.f32 %v2081, %v2084
  %v2086 = vsub.f32 1.0, %v2085
  %v2087 = vmul.f32 %v2084, %v2086
  %v2088 = vadd.f32 %v2084, %v2087
  %vm2089 = vweird.f32 %v2081
  %vm2090 = vweird.f32 %v2084
  %vm2091 = vmor %vm2089, %vm2090
  %v2092 = vsel %vm2091, %v2084, %v2088
  %v2093 = vand.u32 2147483647, %v2081
  %vm2094 = vcmp.eq.f32.partialorder %v2093, 8.507059e+37
  %v2095 = vand.u32 %v2081, 2147483648
  %v2096 = vor.u32 1.1754944e-38, %v2095
  %v2097 = vsel %vm2094, %v2096, %v2092
  %v2098 = vmul.f32 1.0, %v2097
  %v2099 = vrcp.pop %v2082
  %v2100 = vmul.f32 %v2082, %v2099
  %v2101 = vsub.f32 1.0, %v2100
  %v2102 = vmul.f32 %v2099, %v2101
  %v2103 = vadd.f32 %v2099, %v2102
  %vm2104 = vweird.f32 %v2082
  %vm2105 = vweird.f32 %v2099
  %vm2106 = vmor %vm2104, %vm2105
  %v2107 = vsel %vm2106, %v2099, %v2103
  %v2108 = vand.u32 2147483647, %v2082
  %vm2109 = vcmp.eq.f32.partialorder %v2108, 8.507059e+37
  %v2110 = vand.u32 %v2082, 2147483648
  %v2111 = vor.u32 1.1754944e-38, %v2110
  %v2112 = vsel %vm2109, %v2111, %v2107
  %v2113 = vmul.f32 1.0, %v2112
  %v2114 = vrcp.pop %v2083
  %v2115 = vmul.f32 %v2083, %v2114
  %v2116 = vsub.f32 1.0, %v2115
  %v2117 = vmul.f32 %v2114, %v2116
  %v2118 = vadd.f32 %v2114, %v2117
  %vm2119 = vweird.f32 %v2083
  %vm2120 = vweird.f32 %v2114
  %vm2121 = vmor %vm2119, %vm2120
  %v2122 = vsel %vm2121, %v2114, %v2118
  %v2123 = vand.u32 2147483647, %v2083
  %vm2124 = vcmp.eq.f32.partialorder %v2123, 8.507059e+37
  %v2125 = vand.u32 %v2083, 2147483648
  %v2126 = vor.u32 1.1754944e-38, %v2125
  %v2127 = vsel %vm2124, %v2126, %v2122
  %v2128 = vmul.f32 1.0, %v2127
  %v2129 = vtanh.pop %v2070
  %v2130 = vmul.f32 %v2113, %v1985
  %v2131 = vmul.f32 %v2098, %v2129
  %v2132 = vadd.f32 %v2130, %v2131
  %v2133 = vtanh.pop %v2132
  %v2134 = vmul.f32 %v2128, %v2133
  %v2135 = vld [vmem:[%s6] sm:$0xff]
  %v2136 = vld [vmem:[%s6 + $0x8] sm:$0xff]
  %v2137 = vld [vmem:[%s6 + $0x10] sm:$0xff]
  %v2138 = vld [vmem:[%s6 + $0x18] sm:$0xff]
  %v2139 = vld [vmem:[%s6 + $0x20] sm:$0xff]
  %v2140 = vld [vmem:[%s6 + $0x28] sm:$0xff]
  %v2141 = vld [vmem:[%s6 + $0x30] sm:$0xff]
  %v2142 = vld [vmem:[%s6 + $0x38] sm:$0xff]
  %v2143 = vld [vmem:[%s6 + $0x40] sm:$0xff]
  %v2144 = vld [vmem:[%s6 + $0x48] sm:$0xff]
  %v2145 = vld [vmem:[%s6 + $0x50] sm:$0xff]
  %v2146 = vld [vmem:[%s6 + $0x58] sm:$0xff]
  %v2147 = vld [vmem:[%s6 + $0x60] sm:$0xff]
  %v2148 = vld [vmem:[%s6 + $0x68] sm:$0xff]
  %v2149 = vld [vmem:[%s6 + $0x70] sm:$0xff]
  %v2150 = vld [vmem:[%s6 + $0x78] sm:$0xff]
  %v2151 = vld [vmem:[%s7] sm:$0x1]
  %v2153 = vperm.slane %v2151, 0
  %2155 = vmatpush.msra.mxu0 %v2150
  %2156 = vmatpush.msra.mxu0 %v2149
  %2157 = vmatpush.msra.mxu0 %v2148
  %2158 = vmatpush.msra.mxu0 %v2147
  %2159 = vmatpush.msra.mxu0 %v2146
  %2160 = vmatpush.msra.mxu0 %v2145
  %2161 = vmatpush.msra.mxu0 %v2144
  %2162 = vmatpush.msra.mxu0 %v2143
  %2163 = vmatpush.msra.mxu0 %v2142
  %2164 = vmatpush.msra.mxu0 %v2141
  %2165 = vmatpush.msra.mxu0 %v2140
  %2166 = vmatpush.msra.mxu0 %v2139
  %2167 = vmatpush.msra.mxu0 %v2138
  %2168 = vmatpush.msra.mxu0 %v2137
  %2169 = vmatpush.msra.mxu0 %v2136
  %2170 = vmatpush.msra.mxu0 %v2135
  %2171 = vmatmul.f32.gmra.mxu0 %v2134
  %v2172 = vpop.f32.mrf.mxu0
  %v2173 = vadd.f32 %v2153, %v2172
  %2174 = vdwg.mxu0
  %2175 = vmax.xlane.f32.xlu0 %v2173
  %v2176 = vpop.xlane.xlu0 %2175
  %v2177 = vsub.f32 %v2173, %v2176
  %v2178 = vmul.f32 %v2177, 1.442695
  %v2179 = vpow.pop %v2178
  %2180 = vadd.xlane.f32.xlu0 %v2179
  %v2181 = vpop.xlane.xlu0 %2180
  %v2182 = vrcp.pop %v2181
  %v2183 = vmul.f32 %v2179, %v2182
  %2184 = vst [vmem:[%s8] sm:$0xff] %v2183
  // Predicated region
  $region34: #{model_forward.1} parent=0 // pred_check
    _
  $region35: #{model_forward.1} parent=0 // pred_check_branch
    %2186 = sbr.rel (0) target = $region37
  $region36: #{model_forward.1} parent=0 // pred_region
    _
  $region37: #{model_forward.1} parent=0 // pred_fallthru
    _
  // Predicated region
  $region38: #{model_forward.1} parent=0 // pred_check
    _
  $region39: #{model_forward.1} parent=0 // pred_check_branch
    %2188 = sbr.rel (0) target = $region41
  $region40: #{model_forward.1} parent=0 // pred_region
    _
  $region41: #{model_forward.1} parent=0 // pred_fallthru
    _

</llo_original>
